<compile_context>
chip_gen: v5e
topology: v5e:2x2
jax: 0.10.0
libtpu: 0.0.40
codegen_flags: <defaults>
</compile_context>

<pallas_src>
import functools

import jax
import jax.numpy as jnp
from jax.experimental import pallas as pl
from jax.experimental.pallas import tpu as pltpu

# ----- small synthetic BERT config -----
VOCAB = 100
TYPE_VOCAB = 2
MAX_POS = 16
HIDDEN = 32
N_LAYERS = 2
N_HEADS = 4
HEAD_DIM = HIDDEN // N_HEADS
INTERMEDIATE = 64
NUM_LABELS = 2
LN_EPS = 1e-12
LOGIT_PAD = 128          # lane-dense padded logits width


# ---------------- fused Pallas kernel ----------------

def _bert_fused_kernel(
    # inputs
    h_ref, mask_ref, emb_g_ref, emb_b_ref,
    qkv_w_ref, qkv_b_ref, wo_ref, bo_ref, ln1_g_ref, ln1_b_ref,
    wi_ref, bi_ref, wo2_ref, bo2_ref, ln2_g_ref, ln2_b_ref,
    pool_w_ref, pool_b_ref, cls_w_ref, cls_b_ref,
    # output
    out_ref,
    *, batch, seq, n_heads, head_dim, n_layers):
  hidden = n_heads * head_dim
  tokens = batch * seq

  def layer_norm(x, gamma, beta):
    mean = jnp.mean(x, axis=-1, keepdims=True)
    var = jnp.mean(jnp.square(x - mean), axis=-1, keepdims=True)
    return (x - mean) * jax.lax.rsqrt(var + LN_EPS) * gamma + beta

  # additive mask (block-diagonal over batches + HF key mask), loaded ONCE
  mask = mask_ref[...]                                               # [B*S, B*S]

  # --- embedding LayerNorm (embedding dropout p=0.1 -> identity in eval mode) ---
  h = layer_norm(h_ref[...], emb_g_ref[...], emb_b_ref[...])         # [B*S, H]

  # --- encoder layers (unrolled; all weights stay resident in VMEM) ---
  for l in range(n_layers):
    # fused Q|K|V projection; 1/sqrt(Dh) already folded into the Q columns/bias
    qkv = (jnp.dot(h, qkv_w_ref[l], preferred_element_type=jnp.float32)
           + qkv_b_ref[l])                                           # [B*S, 3H]

    # per-head score blocks over ALL tokens, stacked on sublanes
    score_blocks = []
    for hd in range(n_heads):
      c0 = hd * head_dim
      q_h = qkv[:, c0:c0 + head_dim]                                 # [B*S, Dh]
      k_h = qkv[:, hidden + c0:hidden + c0 + head_dim]
      s_h = jax.lax.dot_general(q_h, k_h, (((1,), (1,)), ((), ())),
                                preferred_element_type=jnp.float32)  # [B*S, B*S]
      score_blocks.append(s_h + mask)
    s_all = jnp.concatenate(score_blocks, axis=0)                    # [H*B*S, B*S]

    # ONE softmax normalization for every (head, query-row)
    s_all = s_all - jnp.max(s_all, axis=-1, keepdims=True)
    p_all = jnp.exp(s_all)
    p_all = p_all * pl.reciprocal(jnp.sum(p_all, axis=-1, keepdims=True), approx=True)

    # per-head context, merged on lanes, then ONE output projection over all tokens
    ctx_blocks = []
    for hd in range(n_heads):
      c0 = hd * head_dim
      v_h = qkv[:, 2 * hidden + c0:2 * hidden + c0 + head_dim]       # [B*S, Dh]
      p_h = p_all[hd * tokens:(hd + 1) * tokens, :]                  # sublane-aligned slice
      ctx_blocks.append(jnp.dot(p_h, v_h, preferred_element_type=jnp.float32))
    ctx = jnp.concatenate(ctx_blocks, axis=1)                        # [B*S, H]

    attn = jnp.dot(ctx, wo_ref[l], preferred_element_type=jnp.float32) + bo_ref[l]
    h = layer_norm(attn + h, ln1_g_ref[l], ln1_b_ref[l])             # post-attn add&norm

    inter = jnp.dot(h, wi_ref[l], preferred_element_type=jnp.float32) + bi_ref[l]
    # TODO(synk): HF BERT uses exact erf-GELU; tanh approximation used here.
    inter = jax.nn.gelu(inter, approximate=True)
    ffn = jnp.dot(inter, wo2_ref[l], preferred_element_type=jnp.float32) + bo2_ref[l]
    h = layer_norm(ffn + h, ln2_g_ref[l], ln2_b_ref[l])              # post-FFN add&norm

  # --- pooler + classifier (batched across B; dropout p=0.1 -> identity) ---
  # gather the B [CLS] rows with a one-hot selector matmul (single MXU push, no
  # per-row slices), then one pooler matmul + tanh + one classifier matmul and a
  # single lane-dense [B, 128] store.
  qpos = jax.lax.broadcasted_iota(jnp.int32, (batch, tokens), 0) * seq
  kpos = jax.lax.broadcasted_iota(jnp.int32, (batch, tokens), 1)
  sel = (qpos == kpos).astype(jnp.float32)                           # [B, B*S] one-hot
  cls_rows = jnp.dot(sel, h, preferred_element_type=jnp.float32)     # [B, H]

  pooled = jnp.tanh(
      jnp.dot(cls_rows, pool_w_ref[...], preferred_element_type=jnp.float32)
      + pool_b_ref[...])                                             # [B, H]
  out_ref[...] = (jnp.dot(pooled, cls_w_ref[...], preferred_element_type=jnp.float32)
                  + cls_b_ref[...])                                  # [B, LOGIT_PAD]


# ---------------- parameters ----------------

def init_params(key):
  def nrm(k, shape):
    return 0.02 * jax.random.normal(k, shape, dtype=jnp.float32)

  keys = iter(jax.random.split(key, 64))
  p = {
      "word_emb": nrm(next(keys), (VOCAB, HIDDEN)),
      "pos_emb": nrm(next(keys), (MAX_POS, HIDDEN)),
      "type_emb": nrm(next(keys), (TYPE_VOCAB, HIDDEN)),
      "emb_ln_g": jnp.ones((HIDDEN,), jnp.float32),
      "emb_ln_b": jnp.zeros((HIDDEN,), jnp.float32),
      "layers": [],
  }
  for _ in range(N_LAYERS):
    p["layers"].append({
        "wq": nrm(next(keys), (HIDDEN, HIDDEN)), "bq": jnp.zeros((HIDDEN,), jnp.float32),
        "wk": nrm(next(keys), (HIDDEN, HIDDEN)), "bk": jnp.zeros((HIDDEN,), jnp.float32),
        "wv": nrm(next(keys), (HIDDEN, HIDDEN)), "bv": jnp.zeros((HIDDEN,), jnp.float32),
        "wo": nrm(next(keys), (HIDDEN, HIDDEN)), "bo": jnp.zeros((HIDDEN,), jnp.float32),
        "ln1_g": jnp.ones((HIDDEN,), jnp.float32), "ln1_b": jnp.zeros((HIDDEN,), jnp.float32),
        "wi": nrm(next(keys), (HIDDEN, INTERMEDIATE)), "bi": jnp.zeros((INTERMEDIATE,), jnp.float32),
        "wo2": nrm(next(keys), (INTERMEDIATE, HIDDEN)), "bo2": jnp.zeros((HIDDEN,), jnp.float32),
        "ln2_g": jnp.ones((HIDDEN,), jnp.float32), "ln2_b": jnp.zeros((HIDDEN,), jnp.float32),
    })
  p["pool_w"] = nrm(next(keys), (HIDDEN, HIDDEN))
  p["pool_b"] = jnp.zeros((HIDDEN,), jnp.float32)
  p["cls_w"] = nrm(next(keys), (HIDDEN, NUM_LABELS))
  p["cls_b"] = jnp.zeros((NUM_LABELS,), jnp.float32)
  return p


def pack_params(p):
  """Fuse QKV weights (with 1/sqrt(Dh) folded into Q), stack per-layer tensors, and
  pad the classifier to lane width."""
  scale = 1.0 / float(HEAD_DIM) ** 0.5

  def stk(fn):
    return jnp.stack([fn(lp) for lp in p["layers"]], axis=0)

  return {
      "word_emb": p["word_emb"], "pos_emb": p["pos_emb"], "type_emb": p["type_emb"],
      "emb_ln_g": p["emb_ln_g"].reshape(1, HIDDEN),
      "emb_ln_b": p["emb_ln_b"].reshape(1, HIDDEN),
      "qkv_w": stk(lambda lp: jnp.concatenate(
          [lp["wq"] * scale, lp["wk"], lp["wv"]], axis=1)),
      "qkv_b": stk(lambda lp: jnp.concatenate(
          [lp["bq"] * scale, lp["bk"], lp["bv"]]).reshape(1, 3 * HIDDEN)),
      "wo": stk(lambda lp: lp["wo"]),
      "bo": stk(lambda lp: lp["bo"].reshape(1, HIDDEN)),
      "ln1_g": stk(lambda lp: lp["ln1_g"].reshape(1, HIDDEN)),
      "ln1_b": stk(lambda lp: lp["ln1_b"].reshape(1, HIDDEN)),
      "wi": stk(lambda lp: lp["wi"]),
      "bi": stk(lambda lp: lp["bi"].reshape(1, INTERMEDIATE)),
      "wo2": stk(lambda lp: lp["wo2"]),
      "bo2": stk(lambda lp: lp["bo2"].reshape(1, HIDDEN)),
      "ln2_g": stk(lambda lp: lp["ln2_g"].reshape(1, HIDDEN)),
      "ln2_b": stk(lambda lp: lp["ln2_b"].reshape(1, HIDDEN)),
      "pool_w": p["pool_w"],
      "pool_b": p["pool_b"].reshape(1, HIDDEN),
      "cls_w": jnp.zeros((HIDDEN, LOGIT_PAD), jnp.float32).at[:, :NUM_LABELS].set(p["cls_w"]),
      "cls_b": jnp.zeros((1, LOGIT_PAD), jnp.float32).at[0, :NUM_LABELS].set(p["cls_b"]),
  }


# ---------------- forward pass ----------------

def classify_forward(packed, input_ids, attention_mask, token_type_ids):
  B, S = input_ids.shape
  BS = B * S

  # --- BERT embeddings (gathers are plain-JAX glue) ---
  pos_ids = jnp.arange(S, dtype=jnp.int32)
  h0 = (jnp.take(packed["word_emb"], input_ids, axis=0)
        + jnp.take(packed["pos_emb"], pos_ids, axis=0)[None, :, :]
        + jnp.take(packed["type_emb"], token_type_ids, axis=0))
  h0 = h0.reshape(BS, HIDDEN).astype(jnp.float32)

  # HF-style additive key mask, extended to a block-diagonal [B*S, B*S] mask so the
  # kernel can run attention over all batches in one shot (cross-batch entries get
  # -10000 which underflows to exactly 0 after the softmax shift).
  add_mask = (1.0 - attention_mask.astype(jnp.float32)) * -10000.0    # [B, S]
  key_add = add_mask.reshape(BS)                                      # [B*S]
  bid = jnp.repeat(jnp.arange(B, dtype=jnp.int32), S)                 # [B*S]
  same_batch = bid[:, None] == bid[None, :]                           # [B*S, B*S]
  mask_full = jnp.where(same_batch, key_add[None, :], jnp.float32(-10000.0))

  kernel = functools.partial(_bert_fused_kernel, batch=B, seq=S,
                             n_heads=N_HEADS, head_dim=HEAD_DIM, n_layers=N_LAYERS)
  inputs = (h0, mask_full,
            packed["emb_ln_g"], packed["emb_ln_b"],
            packed["qkv_w"], packed["qkv_b"], packed["wo"], packed["bo"],
            packed["ln1_g"], packed["ln1_b"],
            packed["wi"], packed["bi"], packed["wo2"], packed["bo2"],
            packed["ln2_g"], packed["ln2_b"],
            packed["pool_w"], packed["pool_b"], packed["cls_w"], packed["cls_b"])
  in_specs = [pl.BlockSpec(a.shape, lambda i, nd=a.ndim: (0,) * nd) for a in inputs]

  logits_pad = pl.pallas_call(
      kernel,
      out_shape=jax.ShapeDtypeStruct((B, LOGIT_PAD), jnp.float32),
      grid_spec=pltpu.PrefetchScalarGridSpec(
          num_scalar_prefetch=0,
          grid=(1,),
          in_specs=in_specs,
          out_specs=pl.BlockSpec((B, LOGIT_PAD), lambda i: (0, 0))),
      compiler_params=pltpu.CompilerParams(dimension_semantics=("arbitrary",)),
  )(*inputs)

  return logits_pad[:, :NUM_LABELS]


if __name__ == "__main__":
  key = jax.random.PRNGKey(0)
  kp, kid = jax.random.split(key, 2)
  packed = pack_params(init_params(kp))

  B, S = 2, 8
  input_ids = jax.random.randint(kid, (B, S), 0, VOCAB, dtype=jnp.int32)
  attention_mask = jnp.ones((B, S), dtype=jnp.int32)
  token_type_ids = jnp.zeros((B, S), dtype=jnp.int32)

  fwd = jax.jit(classify_forward)
  logits = fwd(packed, input_ids, attention_mask, token_type_ids)
  jax.block_until_ready(logits)
  assert logits.shape == (B, NUM_LABELS) and logits.dtype == jnp.float32
  print("KERNEL_OK")
</pallas_src>

<mosaic_0001>
module attributes {stable_mosaic.version = 11 : i64} {
  func.func @_bert_fused_kernel(%arg0: i32, %arg1: memref<16x32xf32, #tpu.memory_space<vmem>>, %arg2: memref<16x16xf32, #tpu.memory_space<vmem>>, %arg3: memref<1x32xf32, #tpu.memory_space<vmem>>, %arg4: memref<1x32xf32, #tpu.memory_space<vmem>>, %arg5: memref<2x32x96xf32, #tpu.memory_space<vmem>>, %arg6: memref<2x1x96xf32, #tpu.memory_space<vmem>>, %arg7: memref<2x32x32xf32, #tpu.memory_space<vmem>>, %arg8: memref<2x1x32xf32, #tpu.memory_space<vmem>>, %arg9: memref<2x1x32xf32, #tpu.memory_space<vmem>>, %arg10: memref<2x1x32xf32, #tpu.memory_space<vmem>>, %arg11: memref<2x32x64xf32, #tpu.memory_space<vmem>>, %arg12: memref<2x1x64xf32, #tpu.memory_space<vmem>>, %arg13: memref<2x64x32xf32, #tpu.memory_space<vmem>>, %arg14: memref<2x1x32xf32, #tpu.memory_space<vmem>>, %arg15: memref<2x1x32xf32, #tpu.memory_space<vmem>>, %arg16: memref<2x1x32xf32, #tpu.memory_space<vmem>>, %arg17: memref<32x32xf32, #tpu.memory_space<vmem>>, %arg18: memref<1x32xf32, #tpu.memory_space<vmem>>, %arg19: memref<32x128xf32, #tpu.memory_space<vmem>>, %arg20: memref<1x128xf32, #tpu.memory_space<vmem>>, %arg21: memref<2x128xf32, #tpu.memory_space<vmem>>) attributes {dimension_semantics = [#tpu.dimension_semantics<arbitrary>], iteration_bounds = array<i64: 1>, scalar_prefetch = 0 : i64, scratch_operands = 0 : i64, tpu.core_type = #tpu.core_type<tc>, window_params = [{pipeline_mode = #tpu.pipeline_mode<synchronous>, transform_indices = @transform_0, window_bounds = array<i64: 16, 32>}, {pipeline_mode = #tpu.pipeline_mode<synchronous>, transform_indices = @transform_1, window_bounds = array<i64: 16, 16>}, {pipeline_mode = #tpu.pipeline_mode<synchronous>, transform_indices = @transform_2, window_bounds = array<i64: 1, 32>}, {pipeline_mode = #tpu.pipeline_mode<synchronous>, transform_indices = @transform_3, window_bounds = array<i64: 1, 32>}, {pipeline_mode = #tpu.pipeline_mode<synchronous>, transform_indices = @transform_4, window_bounds = array<i64: 2, 32, 96>}, {pipeline_mode = #tpu.pipeline_mode<synchronous>, transform_indices = @transform_5, window_bounds = array<i64: 2, 1, 96>}, {pipeline_mode = #tpu.pipeline_mode<synchronous>, transform_indices = @transform_6, window_bounds = array<i64: 2, 32, 32>}, {pipeline_mode = #tpu.pipeline_mode<synchronous>, transform_indices = @transform_7, window_bounds = array<i64: 2, 1, 32>}, {pipeline_mode = #tpu.pipeline_mode<synchronous>, transform_indices = @transform_8, window_bounds = array<i64: 2, 1, 32>}, {pipeline_mode = #tpu.pipeline_mode<synchronous>, transform_indices = @transform_9, window_bounds = array<i64: 2, 1, 32>}, {pipeline_mode = #tpu.pipeline_mode<synchronous>, transform_indices = @transform_10, window_bounds = array<i64: 2, 32, 64>}, {pipeline_mode = #tpu.pipeline_mode<synchronous>, transform_indices = @transform_11, window_bounds = array<i64: 2, 1, 64>}, {pipeline_mode = #tpu.pipeline_mode<synchronous>, transform_indices = @transform_12, window_bounds = array<i64: 2, 64, 32>}, {pipeline_mode = #tpu.pipeline_mode<synchronous>, transform_indices = @transform_13, window_bounds = array<i64: 2, 1, 32>}, {pipeline_mode = #tpu.pipeline_mode<synchronous>, transform_indices = @transform_14, window_bounds = array<i64: 2, 1, 32>}, {pipeline_mode = #tpu.pipeline_mode<synchronous>, transform_indices = @transform_15, window_bounds = array<i64: 2, 1, 32>}, {pipeline_mode = #tpu.pipeline_mode<synchronous>, transform_indices = @transform_16, window_bounds = array<i64: 32, 32>}, {pipeline_mode = #tpu.pipeline_mode<synchronous>, transform_indices = @transform_17, window_bounds = array<i64: 1, 32>}, {pipeline_mode = #tpu.pipeline_mode<synchronous>, transform_indices = @transform_18, window_bounds = array<i64: 32, 128>}, {pipeline_mode = #tpu.pipeline_mode<synchronous>, transform_indices = @transform_19, window_bounds = array<i64: 1, 128>}, {pipeline_mode = #tpu.pipeline_mode<synchronous>, transform_indices = @transform_20, window_bounds = array<i64: 2, 128>}]} {
    %c0 = arith.constant 0 : index
    %c0_0 = arith.constant 0 : index
    %0 = vector.load %arg2[%c0, %c0_0] : memref<16x16xf32, #tpu.memory_space<vmem>>, vector<16x16xf32>
    %c0_1 = arith.constant 0 : index
    %c0_2 = arith.constant 0 : index
    %1 = vector.load %arg1[%c0_1, %c0_2] : memref<16x32xf32, #tpu.memory_space<vmem>>, vector<16x32xf32>
    %c0_3 = arith.constant 0 : index
    %c0_4 = arith.constant 0 : index
    %2 = vector.load %arg3[%c0_3, %c0_4] : memref<1x32xf32, #tpu.memory_space<vmem>>, vector<1x32xf32>
    %c0_5 = arith.constant 0 : index
    %c0_6 = arith.constant 0 : index
    %3 = vector.load %arg4[%c0_5, %c0_6] : memref<1x32xf32, #tpu.memory_space<vmem>>, vector<1x32xf32>
    %cst = arith.constant dense<0.000000e+00> : vector<16xf32>
    %4 = vector.multi_reduction <add>, %1, %cst [1] : vector<16x32xf32> to vector<16xf32>
    %5 = vector.shape_cast %4 : vector<16xf32> to vector<16x1xf32>
    %cst_7 = arith.constant 3.200000e+01 : f32
    %6 = vector.broadcast %cst_7 : f32 to vector<16x1xf32>
    %7 = arith.divf %5, %6 : vector<16x1xf32>
    %8 = vector.broadcast %7 : vector<16x1xf32> to vector<16x32xf32>
    %9 = arith.subf %1, %8 : vector<16x32xf32>
    %10 = arith.mulf %9, %9 : vector<16x32xf32>
    %cst_8 = arith.constant dense<0.000000e+00> : vector<16xf32>
    %11 = vector.multi_reduction <add>, %10, %cst_8 [1] : vector<16x32xf32> to vector<16xf32>
    %12 = vector.shape_cast %11 : vector<16xf32> to vector<16x1xf32>
    %cst_9 = arith.constant 3.200000e+01 : f32
    %13 = vector.broadcast %cst_9 : f32 to vector<16x1xf32>
    %14 = arith.divf %12, %13 : vector<16x1xf32>
    %15 = vector.broadcast %7 : vector<16x1xf32> to vector<16x32xf32>
    %16 = arith.subf %1, %15 : vector<16x32xf32>
    %cst_10 = arith.constant 9.99999996E-13 : f32
    %17 = vector.broadcast %cst_10 : f32 to vector<16x1xf32>
    %18 = arith.addf %14, %17 : vector<16x1xf32>
    %19 = math.rsqrt %18 : vector<16x1xf32>
    %20 = vector.broadcast %19 : vector<16x1xf32> to vector<16x32xf32>
    %21 = arith.mulf %16, %20 : vector<16x32xf32>
    %22 = vector.broadcast %2 : vector<1x32xf32> to vector<16x32xf32>
    %23 = arith.mulf %21, %22 : vector<16x32xf32>
    %24 = vector.broadcast %3 : vector<1x32xf32> to vector<16x32xf32>
    %25 = arith.addf %23, %24 : vector<16x32xf32>
    %c0_11 = arith.constant 0 : index
    %c0_12 = arith.constant 0 : index
    %c0_13 = arith.constant 0 : index
    %26 = vector.load %arg5[%c0_11, %c0_12, %c0_13] : memref<2x32x96xf32, #tpu.memory_space<vmem>>, vector<1x32x96xf32>
    %27 = vector.shape_cast %26 : vector<1x32x96xf32> to vector<32x96xf32>
    %cst_14 = arith.constant dense<0.000000e+00> : vector<16x96xf32>
    %28 = tpu.matmul %25, %27, %cst_14 {dimension_numbers = #tpu.dot_dimension_numbers<[1], [0], [0], [1], [0, 0, 1, 1], [], []>} : vector<16x32xf32>, vector<32x96xf32>, vector<16x96xf32> -> vector<16x96xf32>
    %c0_15 = arith.constant 0 : index
    %c0_16 = arith.constant 0 : index
    %c0_17 = arith.constant 0 : index
    %29 = vector.load %arg6[%c0_15, %c0_16, %c0_17] : memref<2x1x96xf32, #tpu.memory_space<vmem>>, vector<1x1x96xf32>
    %30 = vector.shape_cast %29 : vector<1x1x96xf32> to vector<1x96xf32>
    %31 = vector.broadcast %30 : vector<1x96xf32> to vector<16x96xf32>
    %32 = arith.addf %28, %31 : vector<16x96xf32>
    %33 = vector.extract_strided_slice %32 {offsets = [0, 0], sizes = [16, 8], strides = [1, 1]} : vector<16x96xf32> to vector<16x8xf32>
    %34 = vector.extract_strided_slice %32 {offsets = [0, 32], sizes = [16, 8], strides = [1, 1]} : vector<16x96xf32> to vector<16x8xf32>
    %cst_18 = arith.constant dense<0.000000e+00> : vector<16x16xf32>
    %35 = tpu.matmul %33, %34, %cst_18 {dimension_numbers = #tpu.dot_dimension_numbers<[1], [1], [0], [0], [0, 0, 1, 0], [], []>} : vector<16x8xf32>, vector<16x8xf32>, vector<16x16xf32> -> vector<16x16xf32>
    %36 = arith.addf %35, %0 : vector<16x16xf32>
    %37 = vector.extract_strided_slice %32 {offsets = [0, 8], sizes = [16, 8], strides = [1, 1]} : vector<16x96xf32> to vector<16x8xf32>
    %38 = vector.extract_strided_slice %32 {offsets = [0, 40], sizes = [16, 8], strides = [1, 1]} : vector<16x96xf32> to vector<16x8xf32>
    %cst_19 = arith.constant dense<0.000000e+00> : vector<16x16xf32>
    %39 = tpu.matmul %37, %38, %cst_19 {dimension_numbers = #tpu.dot_dimension_numbers<[1], [1], [0], [0], [0, 0, 1, 0], [], []>} : vector<16x8xf32>, vector<16x8xf32>, vector<16x16xf32> -> vector<16x16xf32>
    %40 = arith.addf %39, %0 : vector<16x16xf32>
    %41 = vector.extract_strided_slice %32 {offsets = [0, 16], sizes = [16, 8], strides = [1, 1]} : vector<16x96xf32> to vector<16x8xf32>
    %42 = vector.extract_strided_slice %32 {offsets = [0, 48], sizes = [16, 8], strides = [1, 1]} : vector<16x96xf32> to vector<16x8xf32>
    %cst_20 = arith.constant dense<0.000000e+00> : vector<16x16xf32>
    %43 = tpu.matmul %41, %42, %cst_20 {dimension_numbers = #tpu.dot_dimension_numbers<[1], [1], [0], [0], [0, 0, 1, 0], [], []>} : vector<16x8xf32>, vector<16x8xf32>, vector<16x16xf32> -> vector<16x16xf32>
    %44 = arith.addf %43, %0 : vector<16x16xf32>
    %45 = vector.extract_strided_slice %32 {offsets = [0, 24], sizes = [16, 8], strides = [1, 1]} : vector<16x96xf32> to vector<16x8xf32>
    %46 = vector.extract_strided_slice %32 {offsets = [0, 56], sizes = [16, 8], strides = [1, 1]} : vector<16x96xf32> to vector<16x8xf32>
    %cst_21 = arith.constant dense<0.000000e+00> : vector<16x16xf32>
    %47 = tpu.matmul %45, %46, %cst_21 {dimension_numbers = #tpu.dot_dimension_numbers<[1], [1], [0], [0], [0, 0, 1, 0], [], []>} : vector<16x8xf32>, vector<16x8xf32>, vector<16x16xf32> -> vector<16x16xf32>
    %48 = arith.addf %47, %0 : vector<16x16xf32>
    %49 = tpu.concatenate %36, %40, %44, %48 in 0 : vector<16x16xf32>, vector<16x16xf32>, vector<16x16xf32>, vector<16x16xf32> -> vector<64x16xf32>
    %cst_22 = arith.constant dense<0xFF800000> : vector<64xf32>
    %50 = vector.multi_reduction <maximumf>, %49, %cst_22 [1] : vector<64x16xf32> to vector<64xf32>
    %51 = vector.shape_cast %50 : vector<64xf32> to vector<64x1xf32>
    %52 = vector.broadcast %51 : vector<64x1xf32> to vector<64x16xf32>
    %53 = arith.subf %49, %52 : vector<64x16xf32>
    %54 = math.exp %53 : vector<64x16xf32>
    %cst_23 = arith.constant dense<0.000000e+00> : vector<64xf32>
    %55 = vector.multi_reduction <add>, %54, %cst_23 [1] : vector<64x16xf32> to vector<64xf32>
    %56 = vector.shape_cast %55 : vector<64xf32> to vector<64x1xf32>
    %57 = tpu.reciprocal %56 {approx = true} : vector<64x1xf32> -> vector<64x1xf32>
    %58 = vector.broadcast %57 : vector<64x1xf32> to vector<64x16xf32>
    %59 = arith.mulf %54, %58 : vector<64x16xf32>
    %60 = vector.extract_strided_slice %32 {offsets = [0, 64], sizes = [16, 8], strides = [1, 1]} : vector<16x96xf32> to vector<16x8xf32>
    %61 = vector.extract_strided_slice %59 {offsets = [0, 0], sizes = [16, 16], strides = [1, 1]} : vector<64x16xf32> to vector<16x16xf32>
    %cst_24 = arith.constant dense<0.000000e+00> : vector<16x8xf32>
    %62 = tpu.matmul %61, %60, %cst_24 {dimension_numbers = #tpu.dot_dimension_numbers<[1], [0], [0], [1], [0, 0, 1, 1], [], []>} : vector<16x16xf32>, vector<16x8xf32>, vector<16x8xf32> -> vector<16x8xf32>
    %63 = vector.extract_strided_slice %32 {offsets = [0, 72], sizes = [16, 8], strides = [1, 1]} : vector<16x96xf32> to vector<16x8xf32>
    %64 = vector.extract_strided_slice %59 {offsets = [16, 0], sizes = [16, 16], strides = [1, 1]} : vector<64x16xf32> to vector<16x16xf32>
    %cst_25 = arith.constant dense<0.000000e+00> : vector<16x8xf32>
    %65 = tpu.matmul %64, %63, %cst_25 {dimension_numbers = #tpu.dot_dimension_numbers<[1], [0], [0], [1], [0, 0, 1, 1], [], []>} : vector<16x16xf32>, vector<16x8xf32>, vector<16x8xf32> -> vector<16x8xf32>
    %66 = vector.extract_strided_slice %32 {offsets = [0, 80], sizes = [16, 8], strides = [1, 1]} : vector<16x96xf32> to vector<16x8xf32>
    %67 = vector.extract_strided_slice %59 {offsets = [32, 0], sizes = [16, 16], strides = [1, 1]} : vector<64x16xf32> to vector<16x16xf32>
    %cst_26 = arith.constant dense<0.000000e+00> : vector<16x8xf32>
    %68 = tpu.matmul %67, %66, %cst_26 {dimension_numbers = #tpu.dot_dimension_numbers<[1], [0], [0], [1], [0, 0, 1, 1], [], []>} : vector<16x16xf32>, vector<16x8xf32>, vector<16x8xf32> -> vector<16x8xf32>
    %69 = vector.extract_strided_slice %32 {offsets = [0, 88], sizes = [16, 8], strides = [1, 1]} : vector<16x96xf32> to vector<16x8xf32>
    %70 = vector.extract_strided_slice %59 {offsets = [48, 0], sizes = [16, 16], strides = [1, 1]} : vector<64x16xf32> to vector<16x16xf32>
    %cst_27 = arith.constant dense<0.000000e+00> : vector<16x8xf32>
    %71 = tpu.matmul %70, %69, %cst_27 {dimension_numbers = #tpu.dot_dimension_numbers<[1], [0], [0], [1], [0, 0, 1, 1], [], []>} : vector<16x16xf32>, vector<16x8xf32>, vector<16x8xf32> -> vector<16x8xf32>
    %72 = tpu.concatenate %62, %65, %68, %71 in 1 : vector<16x8xf32>, vector<16x8xf32>, vector<16x8xf32>, vector<16x8xf32> -> vector<16x32xf32>
    %c0_28 = arith.constant 0 : index
    %c0_29 = arith.constant 0 : index
    %c0_30 = arith.constant 0 : index
    %73 = vector.load %arg7[%c0_28, %c0_29, %c0_30] : memref<2x32x32xf32, #tpu.memory_space<vmem>>, vector<1x32x32xf32>
    %74 = vector.shape_cast %73 : vector<1x32x32xf32> to vector<32x32xf32>
    %cst_31 = arith.constant dense<0.000000e+00> : vector<16x32xf32>
    %75 = tpu.matmul %72, %74, %cst_31 {dimension_numbers = #tpu.dot_dimension_numbers<[1], [0], [0], [1], [0, 0, 1, 1], [], []>} : vector<16x32xf32>, vector<32x32xf32>, vector<16x32xf32> -> vector<16x32xf32>
    %c0_32 = arith.constant 0 : index
    %c0_33 = arith.constant 0 : index
    %c0_34 = arith.constant 0 : index
    %76 = vector.load %arg8[%c0_32, %c0_33, %c0_34] : memref<2x1x32xf32, #tpu.memory_space<vmem>>, vector<1x1x32xf32>
    %77 = vector.shape_cast %76 : vector<1x1x32xf32> to vector<1x32xf32>
    %78 = vector.broadcast %77 : vector<1x32xf32> to vector<16x32xf32>
    %79 = arith.addf %75, %78 : vector<16x32xf32>
    %80 = arith.addf %79, %25 : vector<16x32xf32>
    %c0_35 = arith.constant 0 : index
    %c0_36 = arith.constant 0 : index
    %c0_37 = arith.constant 0 : index
    %81 = vector.load %arg9[%c0_35, %c0_36, %c0_37] : memref<2x1x32xf32, #tpu.memory_space<vmem>>, vector<1x1x32xf32>
    %82 = vector.shape_cast %81 : vector<1x1x32xf32> to vector<1x32xf32>
    %c0_38 = arith.constant 0 : index
    %c0_39 = arith.constant 0 : index
    %c0_40 = arith.constant 0 : index
    %83 = vector.load %arg10[%c0_38, %c0_39, %c0_40] : memref<2x1x32xf32, #tpu.memory_space<vmem>>, vector<1x1x32xf32>
    %84 = vector.shape_cast %83 : vector<1x1x32xf32> to vector<1x32xf32>
    %cst_41 = arith.constant dense<0.000000e+00> : vector<16xf32>
    %85 = vector.multi_reduction <add>, %80, %cst_41 [1] : vector<16x32xf32> to vector<16xf32>
    %86 = vector.shape_cast %85 : vector<16xf32> to vector<16x1xf32>
    %cst_42 = arith.constant 3.200000e+01 : f32
    %87 = vector.broadcast %cst_42 : f32 to vector<16x1xf32>
    %88 = arith.divf %86, %87 : vector<16x1xf32>
    %89 = vector.broadcast %88 : vector<16x1xf32> to vector<16x32xf32>
    %90 = arith.subf %80, %89 : vector<16x32xf32>
    %91 = arith.mulf %90, %90 : vector<16x32xf32>
    %cst_43 = arith.constant dense<0.000000e+00> : vector<16xf32>
    %92 = vector.multi_reduction <add>, %91, %cst_43 [1] : vector<16x32xf32> to vector<16xf32>
    %93 = vector.shape_cast %92 : vector<16xf32> to vector<16x1xf32>
    %cst_44 = arith.constant 3.200000e+01 : f32
    %94 = vector.broadcast %cst_44 : f32 to vector<16x1xf32>
    %95 = arith.divf %93, %94 : vector<16x1xf32>
    %96 = vector.broadcast %88 : vector<16x1xf32> to vector<16x32xf32>
    %97 = arith.subf %80, %96 : vector<16x32xf32>
    %cst_45 = arith.constant 9.99999996E-13 : f32
    %98 = vector.broadcast %cst_45 : f32 to vector<16x1xf32>
    %99 = arith.addf %95, %98 : vector<16x1xf32>
    %100 = math.rsqrt %99 : vector<16x1xf32>
    %101 = vector.broadcast %100 : vector<16x1xf32> to vector<16x32xf32>
    %102 = arith.mulf %97, %101 : vector<16x32xf32>
    %103 = vector.broadcast %82 : vector<1x32xf32> to vector<16x32xf32>
    %104 = arith.mulf %102, %103 : vector<16x32xf32>
    %105 = vector.broadcast %84 : vector<1x32xf32> to vector<16x32xf32>
    %106 = arith.addf %104, %105 : vector<16x32xf32>
    %c0_46 = arith.constant 0 : index
    %c0_47 = arith.constant 0 : index
    %c0_48 = arith.constant 0 : index
    %107 = vector.load %arg11[%c0_46, %c0_47, %c0_48] : memref<2x32x64xf32, #tpu.memory_space<vmem>>, vector<1x32x64xf32>
    %108 = vector.shape_cast %107 : vector<1x32x64xf32> to vector<32x64xf32>
    %cst_49 = arith.constant dense<0.000000e+00> : vector<16x64xf32>
    %109 = tpu.matmul %106, %108, %cst_49 {dimension_numbers = #tpu.dot_dimension_numbers<[1], [0], [0], [1], [0, 0, 1, 1], [], []>} : vector<16x32xf32>, vector<32x64xf32>, vector<16x64xf32> -> vector<16x64xf32>
    %c0_50 = arith.constant 0 : index
    %c0_51 = arith.constant 0 : index
    %c0_52 = arith.constant 0 : index
    %110 = vector.load %arg12[%c0_50, %c0_51, %c0_52] : memref<2x1x64xf32, #tpu.memory_space<vmem>>, vector<1x1x64xf32>
    %111 = vector.shape_cast %110 : vector<1x1x64xf32> to vector<1x64xf32>
    %112 = vector.broadcast %111 : vector<1x64xf32> to vector<16x64xf32>
    %113 = arith.addf %109, %112 : vector<16x64xf32>
    %114 = arith.mulf %113, %113 : vector<16x64xf32>
    %115 = arith.mulf %113, %114 : vector<16x64xf32>
    %cst_53 = arith.constant 4.471500e-02 : f32
    %116 = vector.broadcast %cst_53 : f32 to vector<16x64xf32>
    %117 = arith.mulf %116, %115 : vector<16x64xf32>
    %118 = arith.addf %113, %117 : vector<16x64xf32>
    %cst_54 = arith.constant 0.797884583 : f32
    %119 = vector.broadcast %cst_54 : f32 to vector<16x64xf32>
    %120 = arith.mulf %119, %118 : vector<16x64xf32>
    %121 = math.tanh %120 : vector<16x64xf32>
    %cst_55 = arith.constant 1.000000e+00 : f32
    %122 = vector.broadcast %cst_55 : f32 to vector<16x64xf32>
    %123 = arith.addf %122, %121 : vector<16x64xf32>
    %cst_56 = arith.constant 5.000000e-01 : f32
    %124 = vector.broadcast %cst_56 : f32 to vector<16x64xf32>
    %125 = arith.mulf %124, %123 : vector<16x64xf32>
    %126 = arith.mulf %113, %125 : vector<16x64xf32>
    %c0_57 = arith.constant 0 : index
    %c0_58 = arith.constant 0 : index
    %c0_59 = arith.constant 0 : index
    %127 = vector.load %arg13[%c0_57, %c0_58, %c0_59] : memref<2x64x32xf32, #tpu.memory_space<vmem>>, vector<1x64x32xf32>
    %128 = vector.shape_cast %127 : vector<1x64x32xf32> to vector<64x32xf32>
    %cst_60 = arith.constant dense<0.000000e+00> : vector<16x32xf32>
    %129 = tpu.matmul %126, %128, %cst_60 {dimension_numbers = #tpu.dot_dimension_numbers<[1], [0], [0], [1], [0, 0, 1, 1], [], []>} : vector<16x64xf32>, vector<64x32xf32>, vector<16x32xf32> -> vector<16x32xf32>
    %c0_61 = arith.constant 0 : index
    %c0_62 = arith.constant 0 : index
    %c0_63 = arith.constant 0 : index
    %130 = vector.load %arg14[%c0_61, %c0_62, %c0_63] : memref<2x1x32xf32, #tpu.memory_space<vmem>>, vector<1x1x32xf32>
    %131 = vector.shape_cast %130 : vector<1x1x32xf32> to vector<1x32xf32>
    %132 = vector.broadcast %131 : vector<1x32xf32> to vector<16x32xf32>
    %133 = arith.addf %129, %132 : vector<16x32xf32>
    %134 = arith.addf %133, %106 : vector<16x32xf32>
    %c0_64 = arith.constant 0 : index
    %c0_65 = arith.constant 0 : index
    %c0_66 = arith.constant 0 : index
    %135 = vector.load %arg15[%c0_64, %c0_65, %c0_66] : memref<2x1x32xf32, #tpu.memory_space<vmem>>, vector<1x1x32xf32>
    %136 = vector.shape_cast %135 : vector<1x1x32xf32> to vector<1x32xf32>
    %c0_67 = arith.constant 0 : index
    %c0_68 = arith.constant 0 : index
    %c0_69 = arith.constant 0 : index
    %137 = vector.load %arg16[%c0_67, %c0_68, %c0_69] : memref<2x1x32xf32, #tpu.memory_space<vmem>>, vector<1x1x32xf32>
    %138 = vector.shape_cast %137 : vector<1x1x32xf32> to vector<1x32xf32>
    %cst_70 = arith.constant dense<0.000000e+00> : vector<16xf32>
    %139 = vector.multi_reduction <add>, %134, %cst_70 [1] : vector<16x32xf32> to vector<16xf32>
    %140 = vector.shape_cast %139 : vector<16xf32> to vector<16x1xf32>
    %cst_71 = arith.constant 3.200000e+01 : f32
    %141 = vector.broadcast %cst_71 : f32 to vector<16x1xf32>
    %142 = arith.divf %140, %141 : vector<16x1xf32>
    %143 = vector.broadcast %142 : vector<16x1xf32> to vector<16x32xf32>
    %144 = arith.subf %134, %143 : vector<16x32xf32>
    %145 = arith.mulf %144, %144 : vector<16x32xf32>
    %cst_72 = arith.constant dense<0.000000e+00> : vector<16xf32>
    %146 = vector.multi_reduction <add>, %145, %cst_72 [1] : vector<16x32xf32> to vector<16xf32>
    %147 = vector.shape_cast %146 : vector<16xf32> to vector<16x1xf32>
    %cst_73 = arith.constant 3.200000e+01 : f32
    %148 = vector.broadcast %cst_73 : f32 to vector<16x1xf32>
    %149 = arith.divf %147, %148 : vector<16x1xf32>
    %150 = vector.broadcast %142 : vector<16x1xf32> to vector<16x32xf32>
    %151 = arith.subf %134, %150 : vector<16x32xf32>
    %cst_74 = arith.constant 9.99999996E-13 : f32
    %152 = vector.broadcast %cst_74 : f32 to vector<16x1xf32>
    %153 = arith.addf %149, %152 : vector<16x1xf32>
    %154 = math.rsqrt %153 : vector<16x1xf32>
    %155 = vector.broadcast %154 : vector<16x1xf32> to vector<16x32xf32>
    %156 = arith.mulf %151, %155 : vector<16x32xf32>
    %157 = vector.broadcast %136 : vector<1x32xf32> to vector<16x32xf32>
    %158 = arith.mulf %156, %157 : vector<16x32xf32>
    %159 = vector.broadcast %138 : vector<1x32xf32> to vector<16x32xf32>
    %160 = arith.addf %158, %159 : vector<16x32xf32>
    %c1 = arith.constant 1 : index
    %c0_75 = arith.constant 0 : index
    %c0_76 = arith.constant 0 : index
    %161 = vector.load %arg5[%c1, %c0_75, %c0_76] : memref<2x32x96xf32, #tpu.memory_space<vmem>>, vector<1x32x96xf32>
    %162 = vector.shape_cast %161 : vector<1x32x96xf32> to vector<32x96xf32>
    %cst_77 = arith.constant dense<0.000000e+00> : vector<16x96xf32>
    %163 = tpu.matmul %160, %162, %cst_77 {dimension_numbers = #tpu.dot_dimension_numbers<[1], [0], [0], [1], [0, 0, 1, 1], [], []>} : vector<16x32xf32>, vector<32x96xf32>, vector<16x96xf32> -> vector<16x96xf32>
    %c1_78 = arith.constant 1 : index
    %c0_79 = arith.constant 0 : index
    %c0_80 = arith.constant 0 : index
    %164 = vector.load %arg6[%c1_78, %c0_79, %c0_80] : memref<2x1x96xf32, #tpu.memory_space<vmem>>, vector<1x1x96xf32>
    %165 = vector.shape_cast %164 : vector<1x1x96xf32> to vector<1x96xf32>
    %166 = vector.broadcast %165 : vector<1x96xf32> to vector<16x96xf32>
    %167 = arith.addf %163, %166 : vector<16x96xf32>
    %168 = vector.extract_strided_slice %167 {offsets = [0, 0], sizes = [16, 8], strides = [1, 1]} : vector<16x96xf32> to vector<16x8xf32>
    %169 = vector.extract_strided_slice %167 {offsets = [0, 32], sizes = [16, 8], strides = [1, 1]} : vector<16x96xf32> to vector<16x8xf32>
    %cst_81 = arith.constant dense<0.000000e+00> : vector<16x16xf32>
    %170 = tpu.matmul %168, %169, %cst_81 {dimension_numbers = #tpu.dot_dimension_numbers<[1], [1], [0], [0], [0, 0, 1, 0], [], []>} : vector<16x8xf32>, vector<16x8xf32>, vector<16x16xf32> -> vector<16x16xf32>
    %171 = arith.addf %170, %0 : vector<16x16xf32>
    %172 = vector.extract_strided_slice %167 {offsets = [0, 8], sizes = [16, 8], strides = [1, 1]} : vector<16x96xf32> to vector<16x8xf32>
    %173 = vector.extract_strided_slice %167 {offsets = [0, 40], sizes = [16, 8], strides = [1, 1]} : vector<16x96xf32> to vector<16x8xf32>
    %cst_82 = arith.constant dense<0.000000e+00> : vector<16x16xf32>
    %174 = tpu.matmul %172, %173, %cst_82 {dimension_numbers = #tpu.dot_dimension_numbers<[1], [1], [0], [0], [0, 0, 1, 0], [], []>} : vector<16x8xf32>, vector<16x8xf32>, vector<16x16xf32> -> vector<16x16xf32>
    %175 = arith.addf %174, %0 : vector<16x16xf32>
    %176 = vector.extract_strided_slice %167 {offsets = [0, 16], sizes = [16, 8], strides = [1, 1]} : vector<16x96xf32> to vector<16x8xf32>
    %177 = vector.extract_strided_slice %167 {offsets = [0, 48], sizes = [16, 8], strides = [1, 1]} : vector<16x96xf32> to vector<16x8xf32>
    %cst_83 = arith.constant dense<0.000000e+00> : vector<16x16xf32>
    %178 = tpu.matmul %176, %177, %cst_83 {dimension_numbers = #tpu.dot_dimension_numbers<[1], [1], [0], [0], [0, 0, 1, 0], [], []>} : vector<16x8xf32>, vector<16x8xf32>, vector<16x16xf32> -> vector<16x16xf32>
    %179 = arith.addf %178, %0 : vector<16x16xf32>
    %180 = vector.extract_strided_slice %167 {offsets = [0, 24], sizes = [16, 8], strides = [1, 1]} : vector<16x96xf32> to vector<16x8xf32>
    %181 = vector.extract_strided_slice %167 {offsets = [0, 56], sizes = [16, 8], strides = [1, 1]} : vector<16x96xf32> to vector<16x8xf32>
    %cst_84 = arith.constant dense<0.000000e+00> : vector<16x16xf32>
    %182 = tpu.matmul %180, %181, %cst_84 {dimension_numbers = #tpu.dot_dimension_numbers<[1], [1], [0], [0], [0, 0, 1, 0], [], []>} : vector<16x8xf32>, vector<16x8xf32>, vector<16x16xf32> -> vector<16x16xf32>
    %183 = arith.addf %182, %0 : vector<16x16xf32>
    %184 = tpu.concatenate %171, %175, %179, %183 in 0 : vector<16x16xf32>, vector<16x16xf32>, vector<16x16xf32>, vector<16x16xf32> -> vector<64x16xf32>
    %cst_85 = arith.constant dense<0xFF800000> : vector<64xf32>
    %185 = vector.multi_reduction <maximumf>, %184, %cst_85 [1] : vector<64x16xf32> to vector<64xf32>
    %186 = vector.shape_cast %185 : vector<64xf32> to vector<64x1xf32>
    %187 = vector.broadcast %186 : vector<64x1xf32> to vector<64x16xf32>
    %188 = arith.subf %184, %187 : vector<64x16xf32>
    %189 = math.exp %188 : vector<64x16xf32>
    %cst_86 = arith.constant dense<0.000000e+00> : vector<64xf32>
    %190 = vector.multi_reduction <add>, %189, %cst_86 [1] : vector<64x16xf32> to vector<64xf32>
    %191 = vector.shape_cast %190 : vector<64xf32> to vector<64x1xf32>
    %192 = tpu.reciprocal %191 {approx = true} : vector<64x1xf32> -> vector<64x1xf32>
    %193 = vector.broadcast %192 : vector<64x1xf32> to vector<64x16xf32>
    %194 = arith.mulf %189, %193 : vector<64x16xf32>
    %195 = vector.extract_strided_slice %167 {offsets = [0, 64], sizes = [16, 8], strides = [1, 1]} : vector<16x96xf32> to vector<16x8xf32>
    %196 = vector.extract_strided_slice %194 {offsets = [0, 0], sizes = [16, 16], strides = [1, 1]} : vector<64x16xf32> to vector<16x16xf32>
    %cst_87 = arith.constant dense<0.000000e+00> : vector<16x8xf32>
    %197 = tpu.matmul %196, %195, %cst_87 {dimension_numbers = #tpu.dot_dimension_numbers<[1], [0], [0], [1], [0, 0, 1, 1], [], []>} : vector<16x16xf32>, vector<16x8xf32>, vector<16x8xf32> -> vector<16x8xf32>
    %198 = vector.extract_strided_slice %167 {offsets = [0, 72], sizes = [16, 8], strides = [1, 1]} : vector<16x96xf32> to vector<16x8xf32>
    %199 = vector.extract_strided_slice %194 {offsets = [16, 0], sizes = [16, 16], strides = [1, 1]} : vector<64x16xf32> to vector<16x16xf32>
    %cst_88 = arith.constant dense<0.000000e+00> : vector<16x8xf32>
    %200 = tpu.matmul %199, %198, %cst_88 {dimension_numbers = #tpu.dot_dimension_numbers<[1], [0], [0], [1], [0, 0, 1, 1], [], []>} : vector<16x16xf32>, vector<16x8xf32>, vector<16x8xf32> -> vector<16x8xf32>
    %201 = vector.extract_strided_slice %167 {offsets = [0, 80], sizes = [16, 8], strides = [1, 1]} : vector<16x96xf32> to vector<16x8xf32>
    %202 = vector.extract_strided_slice %194 {offsets = [32, 0], sizes = [16, 16], strides = [1, 1]} : vector<64x16xf32> to vector<16x16xf32>
    %cst_89 = arith.constant dense<0.000000e+00> : vector<16x8xf32>
    %203 = tpu.matmul %202, %201, %cst_89 {dimension_numbers = #tpu.dot_dimension_numbers<[1], [0], [0], [1], [0, 0, 1, 1], [], []>} : vector<16x16xf32>, vector<16x8xf32>, vector<16x8xf32> -> vector<16x8xf32>
    %204 = vector.extract_strided_slice %167 {offsets = [0, 88], sizes = [16, 8], strides = [1, 1]} : vector<16x96xf32> to vector<16x8xf32>
    %205 = vector.extract_strided_slice %194 {offsets = [48, 0], sizes = [16, 16], strides = [1, 1]} : vector<64x16xf32> to vector<16x16xf32>
    %cst_90 = arith.constant dense<0.000000e+00> : vector<16x8xf32>
    %206 = tpu.matmul %205, %204, %cst_90 {dimension_numbers = #tpu.dot_dimension_numbers<[1], [0], [0], [1], [0, 0, 1, 1], [], []>} : vector<16x16xf32>, vector<16x8xf32>, vector<16x8xf32> -> vector<16x8xf32>
    %207 = tpu.concatenate %197, %200, %203, %206 in 1 : vector<16x8xf32>, vector<16x8xf32>, vector<16x8xf32>, vector<16x8xf32> -> vector<16x32xf32>
    %c1_91 = arith.constant 1 : index
    %c0_92 = arith.constant 0 : index
    %c0_93 = arith.constant 0 : index
    %208 = vector.load %arg7[%c1_91, %c0_92, %c0_93] : memref<2x32x32xf32, #tpu.memory_space<vmem>>, vector<1x32x32xf32>
    %209 = vector.shape_cast %208 : vector<1x32x32xf32> to vector<32x32xf32>
    %cst_94 = arith.constant dense<0.000000e+00> : vector<16x32xf32>
    %210 = tpu.matmul %207, %209, %cst_94 {dimension_numbers = #tpu.dot_dimension_numbers<[1], [0], [0], [1], [0, 0, 1, 1], [], []>} : vector<16x32xf32>, vector<32x32xf32>, vector<16x32xf32> -> vector<16x32xf32>
    %c1_95 = arith.constant 1 : index
    %c0_96 = arith.constant 0 : index
    %c0_97 = arith.constant 0 : index
    %211 = vector.load %arg8[%c1_95, %c0_96, %c0_97] : memref<2x1x32xf32, #tpu.memory_space<vmem>>, vector<1x1x32xf32>
    %212 = vector.shape_cast %211 : vector<1x1x32xf32> to vector<1x32xf32>
    %213 = vector.broadcast %212 : vector<1x32xf32> to vector<16x32xf32>
    %214 = arith.addf %210, %213 : vector<16x32xf32>
    %215 = arith.addf %214, %160 : vector<16x32xf32>
    %c1_98 = arith.constant 1 : index
    %c0_99 = arith.constant 0 : index
    %c0_100 = arith.constant 0 : index
    %216 = vector.load %arg9[%c1_98, %c0_99, %c0_100] : memref<2x1x32xf32, #tpu.memory_space<vmem>>, vector<1x1x32xf32>
    %217 = vector.shape_cast %216 : vector<1x1x32xf32> to vector<1x32xf32>
    %c1_101 = arith.constant 1 : index
    %c0_102 = arith.constant 0 : index
    %c0_103 = arith.constant 0 : index
    %218 = vector.load %arg10[%c1_101, %c0_102, %c0_103] : memref<2x1x32xf32, #tpu.memory_space<vmem>>, vector<1x1x32xf32>
    %219 = vector.shape_cast %218 : vector<1x1x32xf32> to vector<1x32xf32>
    %cst_104 = arith.constant dense<0.000000e+00> : vector<16xf32>
    %220 = vector.multi_reduction <add>, %215, %cst_104 [1] : vector<16x32xf32> to vector<16xf32>
    %221 = vector.shape_cast %220 : vector<16xf32> to vector<16x1xf32>
    %cst_105 = arith.constant 3.200000e+01 : f32
    %222 = vector.broadcast %cst_105 : f32 to vector<16x1xf32>
    %223 = arith.divf %221, %222 : vector<16x1xf32>
    %224 = vector.broadcast %223 : vector<16x1xf32> to vector<16x32xf32>
    %225 = arith.subf %215, %224 : vector<16x32xf32>
    %226 = arith.mulf %225, %225 : vector<16x32xf32>
    %cst_106 = arith.constant dense<0.000000e+00> : vector<16xf32>
    %227 = vector.multi_reduction <add>, %226, %cst_106 [1] : vector<16x32xf32> to vector<16xf32>
    %228 = vector.shape_cast %227 : vector<16xf32> to vector<16x1xf32>
    %cst_107 = arith.constant 3.200000e+01 : f32
    %229 = vector.broadcast %cst_107 : f32 to vector<16x1xf32>
    %230 = arith.divf %228, %229 : vector<16x1xf32>
    %231 = vector.broadcast %223 : vector<16x1xf32> to vector<16x32xf32>
    %232 = arith.subf %215, %231 : vector<16x32xf32>
    %cst_108 = arith.constant 9.99999996E-13 : f32
    %233 = vector.broadcast %cst_108 : f32 to vector<16x1xf32>
    %234 = arith.addf %230, %233 : vector<16x1xf32>
    %235 = math.rsqrt %234 : vector<16x1xf32>
    %236 = vector.broadcast %235 : vector<16x1xf32> to vector<16x32xf32>
    %237 = arith.mulf %232, %236 : vector<16x32xf32>
    %238 = vector.broadcast %217 : vector<1x32xf32> to vector<16x32xf32>
    %239 = arith.mulf %237, %238 : vector<16x32xf32>
    %240 = vector.broadcast %219 : vector<1x32xf32> to vector<16x32xf32>
    %241 = arith.addf %239, %240 : vector<16x32xf32>
    %c1_109 = arith.constant 1 : index
    %c0_110 = arith.constant 0 : index
    %c0_111 = arith.constant 0 : index
    %242 = vector.load %arg11[%c1_109, %c0_110, %c0_111] : memref<2x32x64xf32, #tpu.memory_space<vmem>>, vector<1x32x64xf32>
    %243 = vector.shape_cast %242 : vector<1x32x64xf32> to vector<32x64xf32>
    %cst_112 = arith.constant dense<0.000000e+00> : vector<16x64xf32>
    %244 = tpu.matmul %241, %243, %cst_112 {dimension_numbers = #tpu.dot_dimension_numbers<[1], [0], [0], [1], [0, 0, 1, 1], [], []>} : vector<16x32xf32>, vector<32x64xf32>, vector<16x64xf32> -> vector<16x64xf32>
    %c1_113 = arith.constant 1 : index
    %c0_114 = arith.constant 0 : index
    %c0_115 = arith.constant 0 : index
    %245 = vector.load %arg12[%c1_113, %c0_114, %c0_115] : memref<2x1x64xf32, #tpu.memory_space<vmem>>, vector<1x1x64xf32>
    %246 = vector.shape_cast %245 : vector<1x1x64xf32> to vector<1x64xf32>
    %247 = vector.broadcast %246 : vector<1x64xf32> to vector<16x64xf32>
    %248 = arith.addf %244, %247 : vector<16x64xf32>
    %249 = arith.mulf %248, %248 : vector<16x64xf32>
    %250 = arith.mulf %248, %249 : vector<16x64xf32>
    %cst_116 = arith.constant 4.471500e-02 : f32
    %251 = vector.broadcast %cst_116 : f32 to vector<16x64xf32>
    %252 = arith.mulf %251, %250 : vector<16x64xf32>
    %253 = arith.addf %248, %252 : vector<16x64xf32>
    %cst_117 = arith.constant 0.797884583 : f32
    %254 = vector.broadcast %cst_117 : f32 to vector<16x64xf32>
    %255 = arith.mulf %254, %253 : vector<16x64xf32>
    %256 = math.tanh %255 : vector<16x64xf32>
    %cst_118 = arith.constant 1.000000e+00 : f32
    %257 = vector.broadcast %cst_118 : f32 to vector<16x64xf32>
    %258 = arith.addf %257, %256 : vector<16x64xf32>
    %cst_119 = arith.constant 5.000000e-01 : f32
    %259 = vector.broadcast %cst_119 : f32 to vector<16x64xf32>
    %260 = arith.mulf %259, %258 : vector<16x64xf32>
    %261 = arith.mulf %248, %260 : vector<16x64xf32>
    %c1_120 = arith.constant 1 : index
    %c0_121 = arith.constant 0 : index
    %c0_122 = arith.constant 0 : index
    %262 = vector.load %arg13[%c1_120, %c0_121, %c0_122] : memref<2x64x32xf32, #tpu.memory_space<vmem>>, vector<1x64x32xf32>
    %263 = vector.shape_cast %262 : vector<1x64x32xf32> to vector<64x32xf32>
    %cst_123 = arith.constant dense<0.000000e+00> : vector<16x32xf32>
    %264 = tpu.matmul %261, %263, %cst_123 {dimension_numbers = #tpu.dot_dimension_numbers<[1], [0], [0], [1], [0, 0, 1, 1], [], []>} : vector<16x64xf32>, vector<64x32xf32>, vector<16x32xf32> -> vector<16x32xf32>
    %c1_124 = arith.constant 1 : index
    %c0_125 = arith.constant 0 : index
    %c0_126 = arith.constant 0 : index
    %265 = vector.load %arg14[%c1_124, %c0_125, %c0_126] : memref<2x1x32xf32, #tpu.memory_space<vmem>>, vector<1x1x32xf32>
    %266 = vector.shape_cast %265 : vector<1x1x32xf32> to vector<1x32xf32>
    %267 = vector.broadcast %266 : vector<1x32xf32> to vector<16x32xf32>
    %268 = arith.addf %264, %267 : vector<16x32xf32>
    %269 = arith.addf %268, %241 : vector<16x32xf32>
    %c1_127 = arith.constant 1 : index
    %c0_128 = arith.constant 0 : index
    %c0_129 = arith.constant 0 : index
    %270 = vector.load %arg15[%c1_127, %c0_128, %c0_129] : memref<2x1x32xf32, #tpu.memory_space<vmem>>, vector<1x1x32xf32>
    %271 = vector.shape_cast %270 : vector<1x1x32xf32> to vector<1x32xf32>
    %c1_130 = arith.constant 1 : index
    %c0_131 = arith.constant 0 : index
    %c0_132 = arith.constant 0 : index
    %272 = vector.load %arg16[%c1_130, %c0_131, %c0_132] : memref<2x1x32xf32, #tpu.memory_space<vmem>>, vector<1x1x32xf32>
    %273 = vector.shape_cast %272 : vector<1x1x32xf32> to vector<1x32xf32>
    %cst_133 = arith.constant dense<0.000000e+00> : vector<16xf32>
    %274 = vector.multi_reduction <add>, %269, %cst_133 [1] : vector<16x32xf32> to vector<16xf32>
    %275 = vector.shape_cast %274 : vector<16xf32> to vector<16x1xf32>
    %cst_134 = arith.constant 3.200000e+01 : f32
    %276 = vector.broadcast %cst_134 : f32 to vector<16x1xf32>
    %277 = arith.divf %275, %276 : vector<16x1xf32>
    %278 = vector.broadcast %277 : vector<16x1xf32> to vector<16x32xf32>
    %279 = arith.subf %269, %278 : vector<16x32xf32>
    %280 = arith.mulf %279, %279 : vector<16x32xf32>
    %cst_135 = arith.constant dense<0.000000e+00> : vector<16xf32>
    %281 = vector.multi_reduction <add>, %280, %cst_135 [1] : vector<16x32xf32> to vector<16xf32>
    %282 = vector.shape_cast %281 : vector<16xf32> to vector<16x1xf32>
    %cst_136 = arith.constant 3.200000e+01 : f32
    %283 = vector.broadcast %cst_136 : f32 to vector<16x1xf32>
    %284 = arith.divf %282, %283 : vector<16x1xf32>
    %285 = vector.broadcast %277 : vector<16x1xf32> to vector<16x32xf32>
    %286 = arith.subf %269, %285 : vector<16x32xf32>
    %cst_137 = arith.constant 9.99999996E-13 : f32
    %287 = vector.broadcast %cst_137 : f32 to vector<16x1xf32>
    %288 = arith.addf %284, %287 : vector<16x1xf32>
    %289 = math.rsqrt %288 : vector<16x1xf32>
    %290 = vector.broadcast %289 : vector<16x1xf32> to vector<16x32xf32>
    %291 = arith.mulf %286, %290 : vector<16x32xf32>
    %292 = vector.broadcast %271 : vector<1x32xf32> to vector<16x32xf32>
    %293 = arith.mulf %291, %292 : vector<16x32xf32>
    %294 = vector.broadcast %273 : vector<1x32xf32> to vector<16x32xf32>
    %295 = arith.addf %293, %294 : vector<16x32xf32>
    %296 = tpu.iota {dimensions = array<i32: 0>} : vector<2x16xi32>
    %c8_i32 = arith.constant 8 : i32
    %297 = vector.broadcast %c8_i32 : i32 to vector<2x16xi32>
    %298 = arith.muli %296, %297 : vector<2x16xi32>
    %299 = tpu.iota {dimensions = array<i32: 1>} : vector<2x16xi32>
    %300 = arith.cmpi eq, %298, %299 : vector<2x16xi32>
    %301 = arith.extui %300 : vector<2x16xi1> to vector<2x16xi32>
    %302 = arith.sitofp %301 : vector<2x16xi32> to vector<2x16xf32>
    %cst_138 = arith.constant dense<0.000000e+00> : vector<2x32xf32>
    %303 = tpu.matmul %302, %295, %cst_138 {dimension_numbers = #tpu.dot_dimension_numbers<[1], [0], [0], [1], [0, 0, 1, 1], [], []>} : vector<2x16xf32>, vector<16x32xf32>, vector<2x32xf32> -> vector<2x32xf32>
    %c0_139 = arith.constant 0 : index
    %c0_140 = arith.constant 0 : index
    %304 = vector.load %arg17[%c0_139, %c0_140] : memref<32x32xf32, #tpu.memory_space<vmem>>, vector<32x32xf32>
    %cst_141 = arith.constant dense<0.000000e+00> : vector<2x32xf32>
    %305 = tpu.matmul %303, %304, %cst_141 {dimension_numbers = #tpu.dot_dimension_numbers<[1], [0], [0], [1], [0, 0, 1, 1], [], []>} : vector<2x32xf32>, vector<32x32xf32>, vector<2x32xf32> -> vector<2x32xf32>
    %c0_142 = arith.constant 0 : index
    %c0_143 = arith.constant 0 : index
    %306 = vector.load %arg18[%c0_142, %c0_143] : memref<1x32xf32, #tpu.memory_space<vmem>>, vector<1x32xf32>
    %307 = vector.broadcast %306 : vector<1x32xf32> to vector<2x32xf32>
    %308 = arith.addf %305, %307 : vector<2x32xf32>
    %309 = math.tanh %308 : vector<2x32xf32>
    %c0_144 = arith.constant 0 : index
    %c0_145 = arith.constant 0 : index
    %310 = vector.load %arg19[%c0_144, %c0_145] : memref<32x128xf32, #tpu.memory_space<vmem>>, vector<32x128xf32>
    %cst_146 = arith.constant dense<0.000000e+00> : vector<2x128xf32>
    %311 = tpu.matmul %309, %310, %cst_146 {dimension_numbers = #tpu.dot_dimension_numbers<[1], [0], [0], [1], [0, 0, 1, 1], [], []>} : vector<2x32xf32>, vector<32x128xf32>, vector<2x128xf32> -> vector<2x128xf32>
    %c0_147 = arith.constant 0 : index
    %c0_148 = arith.constant 0 : index
    %312 = vector.load %arg20[%c0_147, %c0_148] : memref<1x128xf32, #tpu.memory_space<vmem>>, vector<1x128xf32>
    %313 = vector.broadcast %312 : vector<1x128xf32> to vector<2x128xf32>
    %314 = arith.addf %311, %313 : vector<2x128xf32>
    %c0_149 = arith.constant 0 : index
    %c0_150 = arith.constant 0 : index
    %315 = vector.load %arg21[%c0_149, %c0_150] : memref<2x128xf32, #tpu.memory_space<vmem>>, vector<2x128xf32>
    tpu.vector_store %arg21[%c0_149, %c0_150], %314 {strides = array<i32>} : memref<2x128xf32, #tpu.memory_space<vmem>>, vector<2x128xf32>,
    return
  }
  func.func @transform_0(%arg0: i32) -> (i32, i32) {
    %c0_i32 = arith.constant 0 : i32
    %c0_i32_0 = arith.constant 0 : i32
    %c0_i32_1 = arith.constant 0 : i32
    return %c0_i32, %c0_i32_0 : i32, i32
  }
  func.func @transform_1(%arg0: i32) -> (i32, i32) {
    %c0_i32 = arith.constant 0 : i32
    %c0_i32_0 = arith.constant 0 : i32
    %c0_i32_1 = arith.constant 0 : i32
    return %c0_i32, %c0_i32_0 : i32, i32
  }
  func.func @transform_2(%arg0: i32) -> (i32, i32) {
    %c0_i32 = arith.constant 0 : i32
    %c0_i32_0 = arith.constant 0 : i32
    %c0_i32_1 = arith.constant 0 : i32
    return %c0_i32, %c0_i32_0 : i32, i32
  }
  func.func @transform_3(%arg0: i32) -> (i32, i32) {
    %c0_i32 = arith.constant 0 : i32
    %c0_i32_0 = arith.constant 0 : i32
    %c0_i32_1 = arith.constant 0 : i32
    return %c0_i32, %c0_i32_0 : i32, i32
  }
  func.func @transform_4(%arg0: i32) -> (i32, i32, i32) {
    %c0_i32 = arith.constant 0 : i32
    %c0_i32_0 = arith.constant 0 : i32
    %c0_i32_1 = arith.constant 0 : i32
    %c0_i32_2 = arith.constant 0 : i32
    return %c0_i32, %c0_i32_0, %c0_i32_1 : i32, i32, i32
  }
  func.func @transform_5(%arg0: i32) -> (i32, i32, i32) {
    %c0_i32 = arith.constant 0 : i32
    %c0_i32_0 = arith.constant 0 : i32
    %c0_i32_1 = arith.constant 0 : i32
    %c0_i32_2 = arith.constant 0 : i32
    return %c0_i32, %c0_i32_0, %c0_i32_1 : i32, i32, i32
  }
  func.func @transform_6(%arg0: i32) -> (i32, i32, i32) {
    %c0_i32 = arith.constant 0 : i32
    %c0_i32_0 = arith.constant 0 : i32
    %c0_i32_1 = arith.constant 0 : i32
    %c0_i32_2 = arith.constant 0 : i32
    return %c0_i32, %c0_i32_0, %c0_i32_1 : i32, i32, i32
  }
  func.func @transform_7(%arg0: i32) -> (i32, i32, i32) {
    %c0_i32 = arith.constant 0 : i32
    %c0_i32_0 = arith.constant 0 : i32
    %c0_i32_1 = arith.constant 0 : i32
    %c0_i32_2 = arith.constant 0 : i32
    return %c0_i32, %c0_i32_0, %c0_i32_1 : i32, i32, i32
  }
  func.func @transform_8(%arg0: i32) -> (i32, i32, i32) {
    %c0_i32 = arith.constant 0 : i32
    %c0_i32_0 = arith.constant 0 : i32
    %c0_i32_1 = arith.constant 0 : i32
    %c0_i32_2 = arith.constant 0 : i32
    return %c0_i32, %c0_i32_0, %c0_i32_1 : i32, i32, i32
  }
  func.func @transform_9(%arg0: i32) -> (i32, i32, i32) {
    %c0_i32 = arith.constant 0 : i32
    %c0_i32_0 = arith.constant 0 : i32
    %c0_i32_1 = arith.constant 0 : i32
    %c0_i32_2 = arith.constant 0 : i32
    return %c0_i32, %c0_i32_0, %c0_i32_1 : i32, i32, i32
  }
  func.func @transform_10(%arg0: i32) -> (i32, i32, i32) {
    %c0_i32 = arith.constant 0 : i32
    %c0_i32_0 = arith.constant 0 : i32
    %c0_i32_1 = arith.constant 0 : i32
    %c0_i32_2 = arith.constant 0 : i32
    return %c0_i32, %c0_i32_0, %c0_i32_1 : i32, i32, i32
  }
  func.func @transform_11(%arg0: i32) -> (i32, i32, i32) {
    %c0_i32 = arith.constant 0 : i32
    %c0_i32_0 = arith.constant 0 : i32
    %c0_i32_1 = arith.constant 0 : i32
    %c0_i32_2 = arith.constant 0 : i32
    return %c0_i32, %c0_i32_0, %c0_i32_1 : i32, i32, i32
  }
  func.func @transform_12(%arg0: i32) -> (i32, i32, i32) {
    %c0_i32 = arith.constant 0 : i32
    %c0_i32_0 = arith.constant 0 : i32
    %c0_i32_1 = arith.constant 0 : i32
    %c0_i32_2 = arith.constant 0 : i32
    return %c0_i32, %c0_i32_0, %c0_i32_1 : i32, i32, i32
  }
  func.func @transform_13(%arg0: i32) -> (i32, i32, i32) {
    %c0_i32 = arith.constant 0 : i32
    %c0_i32_0 = arith.constant 0 : i32
    %c0_i32_1 = arith.constant 0 : i32
    %c0_i32_2 = arith.constant 0 : i32
    return %c0_i32, %c0_i32_0, %c0_i32_1 : i32, i32, i32
  }
  func.func @transform_14(%arg0: i32) -> (i32, i32, i32) {
    %c0_i32 = arith.constant 0 : i32
    %c0_i32_0 = arith.constant 0 : i32
    %c0_i32_1 = arith.constant 0 : i32
    %c0_i32_2 = arith.constant 0 : i32
    return %c0_i32, %c0_i32_0, %c0_i32_1 : i32, i32, i32
  }
  func.func @transform_15(%arg0: i32) -> (i32, i32, i32) {
    %c0_i32 = arith.constant 0 : i32
    %c0_i32_0 = arith.constant 0 : i32
    %c0_i32_1 = arith.constant 0 : i32
    %c0_i32_2 = arith.constant 0 : i32
    return %c0_i32, %c0_i32_0, %c0_i32_1 : i32, i32, i32
  }
  func.func @transform_16(%arg0: i32) -> (i32, i32) {
    %c0_i32 = arith.constant 0 : i32
    %c0_i32_0 = arith.constant 0 : i32
    %c0_i32_1 = arith.constant 0 : i32
    return %c0_i32, %c0_i32_0 : i32, i32
  }
  func.func @transform_17(%arg0: i32) -> (i32, i32) {
    %c0_i32 = arith.constant 0 : i32
    %c0_i32_0 = arith.constant 0 : i32
    %c0_i32_1 = arith.constant 0 : i32
    return %c0_i32, %c0_i32_0 : i32, i32
  }
  func.func @transform_18(%arg0: i32) -> (i32, i32) {
    %c0_i32 = arith.constant 0 : i32
    %c0_i32_0 = arith.constant 0 : i32
    %c0_i32_1 = arith.constant 0 : i32
    return %c0_i32, %c0_i32_0 : i32, i32
  }
  func.func @transform_19(%arg0: i32) -> (i32, i32) {
    %c0_i32 = arith.constant 0 : i32
    %c0_i32_0 = arith.constant 0 : i32
    %c0_i32_1 = arith.constant 0 : i32
    return %c0_i32, %c0_i32_0 : i32, i32
  }
  func.func @transform_20(%arg0: i32) -> (i32, i32) {
    %c0_i32 = arith.constant 0 : i32
    %c0_i32_0 = arith.constant 0 : i32
    %c0_i32_1 = arith.constant 0 : i32
    return %c0_i32, %c0_i32_0 : i32, i32
  }
}

</mosaic_0001>

<llo_original>
// kernel: classify_forward.1
$region0: #{classify_forward.1}
  #allocation0 [shape = 'u32[]', space=smem, size = 0x4, offset = 0x4, fixed_abs, tag = 'smem constant byte address 0x4 - core index']
  #allocation1 [shape = 'u32[72,128]{1,0:T(1,128)}', space=vmem, size = 0x9000, scoped, tag = 'internal scratch']
  %s0 = inlined_call_operand.vmem [shape: f32[16,32], index: 0, kind: input, shape index: {}]
  %s1 = inlined_call_operand.vmem [shape: f32[16,16], index: 1, kind: input, shape index: {}]
  %s2 = inlined_call_operand.vmem [shape: f32[1,32], index: 2, kind: input, shape index: {}]
  %s3 = inlined_call_operand.vmem [shape: f32[1,32], index: 3, kind: input, shape index: {}]
  %s4 = inlined_call_operand.vmem [shape: f32[2,32,96], index: 4, kind: input, shape index: {}]
  %s5 = inlined_call_operand.vmem [shape: f32[2,1,96], index: 5, kind: input, shape index: {}]
  %s6 = inlined_call_operand.vmem [shape: f32[2,32,32], index: 6, kind: input, shape index: {}]
  %s7 = inlined_call_operand.vmem [shape: f32[2,1,32], index: 7, kind: input, shape index: {}]
  %s8 = inlined_call_operand.vmem [shape: f32[2,1,32], index: 8, kind: input, shape index: {}]
  %s9 = inlined_call_operand.vmem [shape: f32[2,1,32], index: 9, kind: input, shape index: {}]
  %s10 = inlined_call_operand.vmem [shape: f32[2,32,64], index: 10, kind: input, shape index: {}]
  %s11 = inlined_call_operand.vmem [shape: f32[2,1,64], index: 11, kind: input, shape index: {}]
  %s12 = inlined_call_operand.vmem [shape: f32[2,64,32], index: 12, kind: input, shape index: {}]
  %s13 = inlined_call_operand.vmem [shape: f32[2,1,32], index: 13, kind: input, shape index: {}]
  %s14 = inlined_call_operand.vmem [shape: f32[2,1,32], index: 14, kind: input, shape index: {}]
  %s15 = inlined_call_operand.vmem [shape: f32[2,1,32], index: 15, kind: input, shape index: {}]
  %s16 = inlined_call_operand.vmem [shape: f32[32,32], index: 16, kind: input, shape index: {}]
  %s17 = inlined_call_operand.vmem [shape: f32[1,32], index: 17, kind: input, shape index: {}]
  %s18 = inlined_call_operand.vmem [shape: f32[32,128], index: 18, kind: input, shape index: {}]
  %s19 = inlined_call_operand.vmem [shape: f32[1,128], index: 19, kind: input, shape index: {}]
  %s20 = inlined_call_operand.hbm [shape: f32[2,128], index: 20, kind: output, shape index: {}]
  %s21 = sld [smem:[#allocation0]]
  $region90: #{classify_forward.1} parent=0
    _
  %s23 = ssub.s32 1, %s21
  %s24 = scalar_select 0, %s23, %s21
  $region1: #{classify_forward.1} parent=0
    #allocation2 [shape = 'u8[1024]{0}', space=vmem, size = 0x400, scoped, tag = 'output window, operand 0, single buffered']
    #allocation3 [shape = 's32[1]{0}', space=sflag, size = 0x4, scoped, tag = 'scoped memory for classify_forward.1']
    %25 = vsyncpa [#allocation3], 0
    // Predicated region
    $region2: #{classify_forward.1} parent=1 // pred_check
      _
    $region3: #{classify_forward.1} parent=1 // pred_check_branch
      %27 = sbr.rel (0) target = $region5
    $region4: #{classify_forward.1} parent=1 // pred_region
      _
    $region5: #{classify_forward.1} parent=1 // pred_fallthru
      _
    // Predicated region
    $region6: #{classify_forward.1} parent=1 // pred_check
      _
    $region7: #{classify_forward.1} parent=1 // pred_check_branch
      %29 = sbr.rel (0) target = $region9
    $region8: #{classify_forward.1} parent=1 // pred_region
      _
    $region9: #{classify_forward.1} parent=1 // pred_fallthru
      _
    // Predicated region
    $region10: #{classify_forward.1} parent=1 // pred_check
      _
    $region11: #{classify_forward.1} parent=1 // pred_check_branch
      %31 = sbr.rel (0) target = $region13
    $region12: #{classify_forward.1} parent=1 // pred_region
      _
    $region13: #{classify_forward.1} parent=1 // pred_fallthru
      _
    // Predicated region
    $region14: #{classify_forward.1} parent=1 // pred_check
      _
    $region15: #{classify_forward.1} parent=1 // pred_check_branch
      %33 = sbr.rel (0) target = $region17
    $region16: #{classify_forward.1} parent=1 // pred_region
      _
    $region17: #{classify_forward.1} parent=1 // pred_fallthru
      _
    // Predicated region
    $region18: #{classify_forward.1} parent=1 // pred_check
      _
    $region19: #{classify_forward.1} parent=1 // pred_check_branch
      %35 = sbr.rel (0) target = $region21
    $region20: #{classify_forward.1} parent=1 // pred_region
      _
    $region21: #{classify_forward.1} parent=1 // pred_fallthru
      _
    // Predicated region
    $region22: #{classify_forward.1} parent=1 // pred_check
      _
    $region23: #{classify_forward.1} parent=1 // pred_check_branch
      %37 = sbr.rel (0) target = $region25
    $region24: #{classify_forward.1} parent=1 // pred_region
      _
    $region25: #{classify_forward.1} parent=1 // pred_fallthru
      _
    // Predicated region
    $region26: #{classify_forward.1} parent=1 // pred_check
      _
    $region27: #{classify_forward.1} parent=1 // pred_check_branch
      %39 = sbr.rel (0) target = $region29
    $region28: #{classify_forward.1} parent=1 // pred_region
      _
    $region29: #{classify_forward.1} parent=1 // pred_fallthru
      _
    // Predicated region
    $region30: #{classify_forward.1} parent=1 // pred_check
      _
    $region31: #{classify_forward.1} parent=1 // pred_check_branch
      %41 = sbr.rel (0) target = $region33
    $region32: #{classify_forward.1} parent=1 // pred_region
      _
    $region33: #{classify_forward.1} parent=1 // pred_fallthru
      _
    // Predicated region
    $region34: #{classify_forward.1} parent=1 // pred_check
      _
    $region35: #{classify_forward.1} parent=1 // pred_check_branch
      %43 = sbr.rel (0) target = $region37
    $region36: #{classify_forward.1} parent=1 // pred_region
      _
    $region37: #{classify_forward.1} parent=1 // pred_fallthru
      _
    // Predicated region
    $region38: #{classify_forward.1} parent=1 // pred_check
      _
    $region39: #{classify_forward.1} parent=1 // pred_check_branch
      %45 = sbr.rel (0) target = $region41
    $region40: #{classify_forward.1} parent=1 // pred_region
      _
    $region41: #{classify_forward.1} parent=1 // pred_fallthru
      _
    // Predicated region
    $region42: #{classify_forward.1} parent=1 // pred_check
      _
    $region43: #{classify_forward.1} parent=1 // pred_check_branch
      %47 = sbr.rel (0) target = $region45
    $region44: #{classify_forward.1} parent=1 // pred_region
      _
    $region45: #{classify_forward.1} parent=1 // pred_fallthru
      _
    // Predicated region
    $region46: #{classify_forward.1} parent=1 // pred_check
      _
    $region47: #{classify_forward.1} parent=1 // pred_check_branch
      %49 = sbr.rel (0) target = $region49
    $region48: #{classify_forward.1} parent=1 // pred_region
      _
    $region49: #{classify_forward.1} parent=1 // pred_fallthru
      _
    // Predicated region
    $region50: #{classify_forward.1} parent=1 // pred_check
      _
    $region51: #{classify_forward.1} parent=1 // pred_check_branch
      %51 = sbr.rel (0) target = $region53
    $region52: #{classify_forward.1} parent=1 // pred_region
      _
    $region53: #{classify_forward.1} parent=1 // pred_fallthru
      _
    // Predicated region
    $region54: #{classify_forward.1} parent=1 // pred_check
      _
    $region55: #{classify_forward.1} parent=1 // pred_check_branch
      %53 = sbr.rel (0) target = $region57
    $region56: #{classify_forward.1} parent=1 // pred_region
      _
    $region57: #{classify_forward.1} parent=1 // pred_fallthru
      _
    // Predicated region
    $region58: #{classify_forward.1} parent=1 // pred_check
      _
    $region59: #{classify_forward.1} parent=1 // pred_check_branch
      %55 = sbr.rel (0) target = $region61
    $region60: #{classify_forward.1} parent=1 // pred_region
      _
    $region61: #{classify_forward.1} parent=1 // pred_fallthru
      _
    // Predicated region
    $region62: #{classify_forward.1} parent=1 // pred_check
      _
    $region63: #{classify_forward.1} parent=1 // pred_check_branch
      %57 = sbr.rel (0) target = $region65
    $region64: #{classify_forward.1} parent=1 // pred_region
      _
    $region65: #{classify_forward.1} parent=1 // pred_fallthru
      _
    // Predicated region
    $region66: #{classify_forward.1} parent=1 // pred_check
      _
    $region67: #{classify_forward.1} parent=1 // pred_check_branch
      %59 = sbr.rel (0) target = $region69
    $region68: #{classify_forward.1} parent=1 // pred_region
      _
    $region69: #{classify_forward.1} parent=1 // pred_fallthru
      _
    // Predicated region
    $region70: #{classify_forward.1} parent=1 // pred_check
      _
    $region71: #{classify_forward.1} parent=1 // pred_check_branch
      %61 = sbr.rel (0) target = $region73
    $region72: #{classify_forward.1} parent=1 // pred_region
      _
    $region73: #{classify_forward.1} parent=1 // pred_fallthru
      _
    // Predicated region
    $region74: #{classify_forward.1} parent=1 // pred_check
      _
    $region75: #{classify_forward.1} parent=1 // pred_check_branch
      %63 = sbr.rel (0) target = $region77
    $region76: #{classify_forward.1} parent=1 // pred_region
      _
    $region77: #{classify_forward.1} parent=1 // pred_fallthru
      _
    // Predicated region
    $region78: #{classify_forward.1} parent=1 // pred_check
      _
    $region79: #{classify_forward.1} parent=1 // pred_check_branch
      %65 = sbr.rel (0) target = $region81
    $region80: #{classify_forward.1} parent=1 // pred_region
      _
    $region81: #{classify_forward.1} parent=1 // pred_fallthru
      _
    %v66 = vld [vmem:[%s1] sm:$0xff]
    %v67 = vld [vmem:[%s1 + $0x8] sm:$0xff]
    %v68 = vld [vmem:[%s0] sm:$0xff]
    %v69 = vld [vmem:[%s0 + $0x8] sm:$0xff]
    %v70 = vld [vmem:[%s2] sm:$0x1]
    %v71 = vld [vmem:[%s3] sm:$0x1]
    %vm72 = vcmask 261120
    %v73 = vsel %vm72, %v68, 0.0
    %74 = vadd.xlane.f32.xlu0 %v73
    %v75 = vpop.xlane.xlu0 %74
    %v76 = vsel %vm72, %v69, 0.0
    %77 = vadd.xlane.f32.xlu0 %v76
    %v78 = vpop.xlane.xlu0 %77
    %v79 = vrcp.pop 32.0
    %v80 = vmul.f32 32.0, %v79
    %v81 = vsub.f32 1.0, %v80
    %v82 = vmul.f32 %v79, %v81
    %v83 = vadd.f32 %v79, %v82
    %vm84 = vweird.f32 %v79
    %v85 = vsel %vm84, %v79, %v83
    %v86 = vmul.f32 %v75, %v85
    %v87 = vmul.f32 %v78, %v85
    %v88 = vsub.f32 %v68, %v86
    %v89 = vsub.f32 %v69, %v87
    %v90 = vmul.f32 %v88, %v88
    %v91 = vmul.f32 %v89, %v89
    %v92 = vsel %vm72, %v90, 0.0
    %93 = vadd.xlane.f32.xlu0 %v92
    %v94 = vpop.xlane.xlu0 %93
    %v95 = vsel %vm72, %v91, 0.0
    %96 = vadd.xlane.f32.xlu0 %v95
    %v97 = vpop.xlane.xlu0 %96
    %v98 = vmul.f32 %v94, %v85
    %v99 = vmul.f32 %v97, %v85
    %v100 = vadd.f32 %v98, 1e-12
    %v101 = vadd.f32 %v99, 1e-12
    %v102 = vrsqrt.pop %v100
    %v103 = vmul.f32 %v102, %v100
    %v104 = vmul.f32 %v103, %v102
    %v105 = vmul.f32 0.5, %v104
    %v106 = vsub.f32 1.5, %v105
    %v107 = vmul.f32 %v102, %v106
    %vm108 = vweird.f32 %v100
    %vm109 = vweird.f32 %v102
    %vm110 = vmor %vm108, %vm109
    %v111 = vsel %vm110, %v102, %v107
    %v112 = vrsqrt.pop %v101
    %v113 = vmul.f32 %v112, %v101
    %v114 = vmul.f32 %v113, %v112
    %v115 = vmul.f32 0.5, %v114
    %v116 = vsub.f32 1.5, %v115
    %v117 = vmul.f32 %v112, %v116
    %vm118 = vweird.f32 %v101
    %vm119 = vweird.f32 %v112
    %vm120 = vmor %vm118, %vm119
    %v121 = vsel %vm120, %v112, %v117
    %v122 = vmul.f32 %v88, %v111
    %v123 = vmul.f32 %v89, %v121
    %v125 = vperm.slane %v70, 0
    %v127 = vmul.f32 %v122, %v125
    %v128 = vmul.f32 %v123, %v125
    %v130 = vperm.slane %v71, 0
    %v132 = vadd.f32 %v127, %v130
    %v133 = vadd.f32 %v128, %v130
    %v134 = vld [vmem:[%s4] sm:$0xff]
    %v135 = vld [vmem:[%s4 + $0x8] sm:$0xff]
    %v136 = vld [vmem:[%s4 + $0x10] sm:$0xff]
    %v137 = vld [vmem:[%s4 + $0x18] sm:$0xff]
    %v138 = vld [vmem:[%s5] sm:$0x1]
    %v140 = vperm.slane %v138, 0
    %v143 = vsel %vm72, %v132, 0
    %v146 = vsel %vm72, %v133, 0
    %148 = vmatpush.msra.mxu0 0.0
    %149 = vmatpush.msra.mxu0 0.0
    %150 = vmatpush.msra.mxu0 0.0
    %151 = vmatpush.msra.mxu0 0.0
    %152 = vmatpush.msra.mxu0 0.0
    %153 = vmatpush.msra.mxu0 0.0
    %154 = vmatpush.msra.mxu0 0.0
    %155 = vmatpush.msra.mxu0 0.0
    %156 = vmatpush.msra.mxu0 0.0
    %157 = vmatpush.msra.mxu0 0.0
    %158 = vmatpush.msra.mxu0 0.0
    %159 = vmatpush.msra.mxu0 0.0
    %160 = vmatpush.msra.mxu0 %v137
    %161 = vmatpush.msra.mxu0 %v136
    %162 = vmatpush.msra.mxu0 %v135
    %163 = vmatpush.msra.mxu0 %v134
    %164 = vmatmul.f32.gmra.mxu0 %v143
    %v165 = vpop.f32.mrf.mxu0
    %v166 = vadd.f32 %v140, %v165
    %167 = vmatmul.f32.gmra.mxu0 %v146
    %v168 = vpop.f32.mrf.mxu0
    %v169 = vadd.f32 %v140, %v168
    %170 = vdwg.mxu0
    %173 = vrot.lane.b32.xlu0 %v166, 96
    %v174 = vpop.permute.xlu0 %173
    %175 = vrot.lane.b32.xlu0 %v169, 96
    %v176 = vpop.permute.xlu0 %175
    %vm177 = vcmask 64512
    %v178 = vsel %vm177, %v166, 0
    %v180 = vsel %vm177, %v169, 0
    %v182 = vsel %vm177, %v174, 0
    %v184 = vsel %vm177, %v176, 0
    %186 = vmatpush.xpose.msra.mxu0 0.0
    %187 = vmatpush.xpose.msra.mxu0 0.0
    %188 = vmatpush.xpose.msra.mxu0 0.0
    %189 = vmatpush.xpose.msra.mxu0 0.0
    %190 = vmatpush.xpose.msra.mxu0 0.0
    %191 = vmatpush.xpose.msra.mxu0 0.0
    %192 = vmatpush.xpose.msra.mxu0 0.0
    %193 = vmatpush.xpose.msra.mxu0 0.0
    %194 = vmatpush.xpose.msra.mxu0 0.0
    %195 = vmatpush.xpose.msra.mxu0 0.0
    %196 = vmatpush.xpose.msra.mxu0 0.0
    %197 = vmatpush.xpose.msra.mxu0 0.0
    %198 = vmatpush.xpose.msra.mxu0 0.0
    %199 = vmatpush.xpose.msra.mxu0 0.0
    %200 = vmatpush.xpose.msra.mxu0 %v184
    %201 = vmatpush.xpose.msra.mxu0 %v182
    %202 = vmatmul.f32.gmra.mxu0 %v178
    %v203 = vpop.f32.mrf.mxu0
    %v204 = vadd.f32 %v66, %v203
    %205 = vmatmul.f32.gmra.mxu0 %v180
    %v206 = vpop.f32.mrf.mxu0
    %v207 = vadd.f32 %v67, %v206
    %208 = vdwg.mxu0
    %209 = vrot.lane.b32.xlu0 %v166, 120
    %v210 = vpop.permute.xlu0 %209
    %211 = vrot.lane.b32.xlu0 %v169, 120
    %v212 = vpop.permute.xlu0 %211
    %213 = vrot.lane.b32.xlu0 %v166, 88
    %v214 = vpop.permute.xlu0 %213
    %215 = vrot.lane.b32.xlu0 %v169, 88
    %v216 = vpop.permute.xlu0 %215
    %v217 = vsel %vm177, %v210, 0
    %v219 = vsel %vm177, %v212, 0
    %v221 = vsel %vm177, %v214, 0
    %v223 = vsel %vm177, %v216, 0
    %225 = vmatpush.xpose.msra.mxu0 0.0
    %226 = vmatpush.xpose.msra.mxu0 0.0
    %227 = vmatpush.xpose.msra.mxu0 0.0
    %228 = vmatpush.xpose.msra.mxu0 0.0
    %229 = vmatpush.xpose.msra.mxu0 0.0
    %230 = vmatpush.xpose.msra.mxu0 0.0
    %231 = vmatpush.xpose.msra.mxu0 0.0
    %232 = vmatpush.xpose.msra.mxu0 0.0
    %233 = vmatpush.xpose.msra.mxu0 0.0
    %234 = vmatpush.xpose.msra.mxu0 0.0
    %235 = vmatpush.xpose.msra.mxu0 0.0
    %236 = vmatpush.xpose.msra.mxu0 0.0
    %237 = vmatpush.xpose.msra.mxu0 0.0
    %238 = vmatpush.xpose.msra.mxu0 0.0
    %239 = vmatpush.xpose.msra.mxu0 %v223
    %240 = vmatpush.xpose.msra.mxu0 %v221
    %241 = vmatmul.f32.gmra.mxu0 %v217
    %v242 = vpop.f32.mrf.mxu0
    %v243 = vadd.f32 %v66, %v242
    %244 = vmatmul.f32.gmra.mxu0 %v219
    %v245 = vpop.f32.mrf.mxu0
    %v246 = vadd.f32 %v67, %v245
    %247 = vdwg.mxu0
    %248 = vrot.lane.b32.xlu0 %v166, 112
    %v249 = vpop.permute.xlu0 %248
    %250 = vrot.lane.b32.xlu0 %v169, 112
    %v251 = vpop.permute.xlu0 %250
    %252 = vrot.lane.b32.xlu0 %v166, 80
    %v253 = vpop.permute.xlu0 %252
    %254 = vrot.lane.b32.xlu0 %v169, 80
    %v255 = vpop.permute.xlu0 %254
    %v256 = vsel %vm177, %v249, 0
    %v258 = vsel %vm177, %v251, 0
    %v260 = vsel %vm177, %v253, 0
    %v262 = vsel %vm177, %v255, 0
    %264 = vmatpush.xpose.msra.mxu0 0.0
    %265 = vmatpush.xpose.msra.mxu0 0.0
    %266 = vmatpush.xpose.msra.mxu0 0.0
    %267 = vmatpush.xpose.msra.mxu0 0.0
    %268 = vmatpush.xpose.msra.mxu0 0.0
    %269 = vmatpush.xpose.msra.mxu0 0.0
    %270 = vmatpush.xpose.msra.mxu0 0.0
    %271 = vmatpush.xpose.msra.mxu0 0.0
    %272 = vmatpush.xpose.msra.mxu0 0.0
    %273 = vmatpush.xpose.msra.mxu0 0.0
    %274 = vmatpush.xpose.msra.mxu0 0.0
    %275 = vmatpush.xpose.msra.mxu0 0.0
    %276 = vmatpush.xpose.msra.mxu0 0.0
    %277 = vmatpush.xpose.msra.mxu0 0.0
    %278 = vmatpush.xpose.msra.mxu0 %v262
    %279 = vmatpush.xpose.msra.mxu0 %v260
    %280 = vmatmul.f32.gmra.mxu0 %v256
    %v281 = vpop.f32.mrf.mxu0
    %v282 = vadd.f32 %v66, %v281
    %283 = vmatmul.f32.gmra.mxu0 %v258
    %v284 = vpop.f32.mrf.mxu0
    %v285 = vadd.f32 %v67, %v284
    %286 = vdwg.mxu0
    %287 = vrot.lane.b32.xlu0 %v166, 104
    %v288 = vpop.permute.xlu0 %287
    %289 = vrot.lane.b32.xlu0 %v169, 104
    %v290 = vpop.permute.xlu0 %289
    %291 = vrot.lane.b32.xlu0 %v166, 72
    %v292 = vpop.permute.xlu0 %291
    %293 = vrot.lane.b32.xlu0 %v169, 72
    %v294 = vpop.permute.xlu0 %293
    %v295 = vsel %vm177, %v288, 0
    %v297 = vsel %vm177, %v290, 0
    %v299 = vsel %vm177, %v292, 0
    %v301 = vsel %vm177, %v294, 0
    %303 = vmatpush.xpose.msra.mxu0 0.0
    %304 = vmatpush.xpose.msra.mxu0 0.0
    %305 = vmatpush.xpose.msra.mxu0 0.0
    %306 = vmatpush.xpose.msra.mxu0 0.0
    %307 = vmatpush.xpose.msra.mxu0 0.0
    %308 = vmatpush.xpose.msra.mxu0 0.0
    %309 = vmatpush.xpose.msra.mxu0 0.0
    %310 = vmatpush.xpose.msra.mxu0 0.0
    %311 = vmatpush.xpose.msra.mxu0 0.0
    %312 = vmatpush.xpose.msra.mxu0 0.0
    %313 = vmatpush.xpose.msra.mxu0 0.0
    %314 = vmatpush.xpose.msra.mxu0 0.0
    %315 = vmatpush.xpose.msra.mxu0 0.0
    %316 = vmatpush.xpose.msra.mxu0 0.0
    %317 = vmatpush.xpose.msra.mxu0 %v301
    %318 = vmatpush.xpose.msra.mxu0 %v299
    %319 = vmatmul.f32.gmra.mxu0 %v295
    %v320 = vpop.f32.mrf.mxu0
    %v321 = vadd.f32 %v66, %v320
    %322 = vmatmul.f32.gmra.mxu0 %v297
    %v323 = vpop.f32.mrf.mxu0
    %v324 = vadd.f32 %v67, %v323
    %325 = vdwg.mxu0
    %vm326 = vcmask 130048
    %v327 = vsel %vm326, %v204, -inf
    %328 = vmax.xlane.f32.xlu0 %v327
    %v329 = vpop.xlane.xlu0 %328
    %v330 = vsel %vm326, %v207, -inf
    %331 = vmax.xlane.f32.xlu0 %v330
    %v332 = vpop.xlane.xlu0 %331
    %v333 = vsel %vm326, %v243, -inf
    %334 = vmax.xlane.f32.xlu0 %v333
    %v335 = vpop.xlane.xlu0 %334
    %v336 = vsel %vm326, %v246, -inf
    %337 = vmax.xlane.f32.xlu0 %v336
    %v338 = vpop.xlane.xlu0 %337
    %v339 = vsel %vm326, %v282, -inf
    %340 = vmax.xlane.f32.xlu0 %v339
    %v341 = vpop.xlane.xlu0 %340
    %v342 = vsel %vm326, %v285, -inf
    %343 = vmax.xlane.f32.xlu0 %v342
    %v344 = vpop.xlane.xlu0 %343
    %v345 = vsel %vm326, %v321, -inf
    %346 = vmax.xlane.f32.xlu0 %v345
    %v347 = vpop.xlane.xlu0 %346
    %v348 = vsel %vm326, %v324, -inf
    %349 = vmax.xlane.f32.xlu0 %v348
    %v350 = vpop.xlane.xlu0 %349
    %v351 = vsub.f32 %v204, %v329
    %v352 = vsub.f32 %v207, %v332
    %v353 = vsub.f32 %v243, %v335
    %v354 = vsub.f32 %v246, %v338
    %v355 = vsub.f32 %v282, %v341
    %v356 = vsub.f32 %v285, %v344
    %v357 = vsub.f32 %v321, %v347
    %v358 = vsub.f32 %v324, %v350
    %v359 = vmul.f32 %v351, 1.442695
    %v360 = vpow.pop %v359
    %v361 = vmul.f32 %v352, 1.442695
    %v362 = vpow.pop %v361
    %v363 = vmul.f32 %v353, 1.442695
    %v364 = vpow.pop %v363
    %v365 = vmul.f32 %v354, 1.442695
    %v366 = vpow.pop %v365
    %v367 = vmul.f32 %v355, 1.442695
    %v368 = vpow.pop %v367
    %v369 = vmul.f32 %v356, 1.442695
    %v370 = vpow.pop %v369
    %v371 = vmul.f32 %v357, 1.442695
    %v372 = vpow.pop %v371
    %v373 = vmul.f32 %v358, 1.442695
    %v374 = vpow.pop %v373
    %v375 = vsel %vm326, %v360, 0.0
    %376 = vadd.xlane.f32.xlu0 %v375
    %v377 = vpop.xlane.xlu0 %376
    %v378 = vsel %vm326, %v362, 0.0
    %379 = vadd.xlane.f32.xlu0 %v378
    %v380 = vpop.xlane.xlu0 %379
    %v381 = vsel %vm326, %v364, 0.0
    %382 = vadd.xlane.f32.xlu0 %v381
    %v383 = vpop.xlane.xlu0 %382
    %v384 = vsel %vm326, %v366, 0.0
    %385 = vadd.xlane.f32.xlu0 %v384
    %v386 = vpop.xlane.xlu0 %385
    %v387 = vsel %vm326, %v368, 0.0
    %388 = vadd.xlane.f32.xlu0 %v387
    %v389 = vpop.xlane.xlu0 %388
    %v390 = vsel %vm326, %v370, 0.0
    %391 = vadd.xlane.f32.xlu0 %v390
    %v392 = vpop.xlane.xlu0 %391
    %v393 = vsel %vm326, %v372, 0.0
    %394 = vadd.xlane.f32.xlu0 %v393
    %v395 = vpop.xlane.xlu0 %394
    %v396 = vsel %vm326, %v374, 0.0
    %397 = vadd.xlane.f32.xlu0 %v396
    %v398 = vpop.xlane.xlu0 %397
    %v399 = vrcp.pop %v377
    %v400 = vrcp.pop %v380
    %v401 = vrcp.pop %v383
    %v402 = vrcp.pop %v386
    %v403 = vrcp.pop %v389
    %v404 = vrcp.pop %v392
    %v405 = vrcp.pop %v395
    %v406 = vrcp.pop %v398
    %v407 = vmul.f32 %v360, %v399
    %v408 = vmul.f32 %v362, %v400
    %v409 = vmul.f32 %v364, %v401
    %v410 = vmul.f32 %v366, %v402
    %v411 = vmul.f32 %v368, %v403
    %v412 = vmul.f32 %v370, %v404
    %v413 = vmul.f32 %v372, %v405
    %v414 = vmul.f32 %v374, %v406
    %415 = vrot.lane.b32.xlu0 %v166, 64
    %v416 = vpop.permute.xlu0 %415
    %417 = vrot.lane.b32.xlu0 %v169, 64
    %v418 = vpop.permute.xlu0 %417
    %v422 = vsel %vm326, %v407, 0
    %v425 = vsel %vm326, %v408, 0
    %427 = vmatpush.msra.mxu0 0.0
    %428 = vmatpush.msra.mxu0 0.0
    %429 = vmatpush.msra.mxu0 0.0
    %430 = vmatpush.msra.mxu0 0.0
    %431 = vmatpush.msra.mxu0 0.0
    %432 = vmatpush.msra.mxu0 0.0
    %433 = vmatpush.msra.mxu0 0.0
    %434 = vmatpush.msra.mxu0 0.0
    %435 = vmatpush.msra.mxu0 0.0
    %436 = vmatpush.msra.mxu0 0.0
    %437 = vmatpush.msra.mxu0 0.0
    %438 = vmatpush.msra.mxu0 0.0
    %439 = vmatpush.msra.mxu0 0.0
    %440 = vmatpush.msra.mxu0 0.0
    %441 = vmatpush.msra.mxu0 %v418
    %442 = vmatpush.msra.mxu0 %v416
    %443 = vmatmul.f32.gmra.mxu0 %v422
    %v444 = vpop.f32.mrf.mxu0
    %v445 = vadd.f32 0.0, %v444
    %446 = vmatmul.f32.gmra.mxu0 %v425
    %v447 = vpop.f32.mrf.mxu0
    %v448 = vadd.f32 0.0, %v447
    %449 = vdwg.mxu0
    %450 = vrot.lane.b32.xlu0 %v166, 56
    %v451 = vpop.permute.xlu0 %450
    %452 = vrot.lane.b32.xlu0 %v169, 56
    %v453 = vpop.permute.xlu0 %452
    %v457 = vsel %vm326, %v409, 0
    %v460 = vsel %vm326, %v410, 0
    %462 = vmatpush.msra.mxu0 0.0
    %463 = vmatpush.msra.mxu0 0.0
    %464 = vmatpush.msra.mxu0 0.0
    %465 = vmatpush.msra.mxu0 0.0
    %466 = vmatpush.msra.mxu0 0.0
    %467 = vmatpush.msra.mxu0 0.0
    %468 = vmatpush.msra.mxu0 0.0
    %469 = vmatpush.msra.mxu0 0.0
    %470 = vmatpush.msra.mxu0 0.0
    %471 = vmatpush.msra.mxu0 0.0
    %472 = vmatpush.msra.mxu0 0.0
    %473 = vmatpush.msra.mxu0 0.0
    %474 = vmatpush.msra.mxu0 0.0
    %475 = vmatpush.msra.mxu0 0.0
    %476 = vmatpush.msra.mxu0 %v453
    %477 = vmatpush.msra.mxu0 %v451
    %478 = vmatmul.f32.gmra.mxu0 %v457
    %v479 = vpop.f32.mrf.mxu0
    %v480 = vadd.f32 0.0, %v479
    %481 = vmatmul.f32.gmra.mxu0 %v460
    %v482 = vpop.f32.mrf.mxu0
    %v483 = vadd.f32 0.0, %v482
    %484 = vdwg.mxu0
    %485 = vrot.lane.b32.xlu0 %v166, 48
    %v486 = vpop.permute.xlu0 %485
    %487 = vrot.lane.b32.xlu0 %v169, 48
    %v488 = vpop.permute.xlu0 %487
    %v492 = vsel %vm326, %v411, 0
    %v495 = vsel %vm326, %v412, 0
    %497 = vmatpush.msra.mxu0 0.0
    %498 = vmatpush.msra.mxu0 0.0
    %499 = vmatpush.msra.mxu0 0.0
    %500 = vmatpush.msra.mxu0 0.0
    %501 = vmatpush.msra.mxu0 0.0
    %502 = vmatpush.msra.mxu0 0.0
    %503 = vmatpush.msra.mxu0 0.0
    %504 = vmatpush.msra.mxu0 0.0
    %505 = vmatpush.msra.mxu0 0.0
    %506 = vmatpush.msra.mxu0 0.0
    %507 = vmatpush.msra.mxu0 0.0
    %508 = vmatpush.msra.mxu0 0.0
    %509 = vmatpush.msra.mxu0 0.0
    %510 = vmatpush.msra.mxu0 0.0
    %511 = vmatpush.msra.mxu0 %v488
    %512 = vmatpush.msra.mxu0 %v486
    %513 = vmatmul.f32.gmra.mxu0 %v492
    %v514 = vpop.f32.mrf.mxu0
    %v515 = vadd.f32 0.0, %v514
    %516 = vmatmul.f32.gmra.mxu0 %v495
    %v517 = vpop.f32.mrf.mxu0
    %v518 = vadd.f32 0.0, %v517
    %519 = vdwg.mxu0
    %520 = vrot.lane.b32.xlu0 %v166, 40
    %v521 = vpop.permute.xlu0 %520
    %522 = vrot.lane.b32.xlu0 %v169, 40
    %v523 = vpop.permute.xlu0 %522
    %v527 = vsel %vm326, %v413, 0
    %v530 = vsel %vm326, %v414, 0
    %532 = vmatpush.msra.mxu0 0.0
    %533 = vmatpush.msra.mxu0 0.0
    %534 = vmatpush.msra.mxu0 0.0
    %535 = vmatpush.msra.mxu0 0.0
    %536 = vmatpush.msra.mxu0 0.0
    %537 = vmatpush.msra.mxu0 0.0
    %538 = vmatpush.msra.mxu0 0.0
    %539 = vmatpush.msra.mxu0 0.0
    %540 = vmatpush.msra.mxu0 0.0
    %541 = vmatpush.msra.mxu0 0.0
    %542 = vmatpush.msra.mxu0 0.0
    %543 = vmatpush.msra.mxu0 0.0
    %544 = vmatpush.msra.mxu0 0.0
    %545 = vmatpush.msra.mxu0 0.0
    %546 = vmatpush.msra.mxu0 %v523
    %547 = vmatpush.msra.mxu0 %v521
    %548 = vmatmul.f32.gmra.mxu0 %v527
    %v549 = vpop.f32.mrf.mxu0
    %v550 = vadd.f32 0.0, %v549
    %551 = vmatmul.f32.gmra.mxu0 %v530
    %v552 = vpop.f32.mrf.mxu0
    %v553 = vadd.f32 0.0, %v552
    %554 = vdwg.mxu0
    %557 = vrot.lane.b32.xlu0 %v480, 8
    %v558 = vpop.permute.xlu0 %557
    %559 = vrot.lane.b32.xlu0 %v483, 8
    %v560 = vpop.permute.xlu0 %559
    %565 = vrot.lane.b32.xlu0 %v515, 16
    %v566 = vpop.permute.xlu0 %565
    %567 = vrot.lane.b32.xlu0 %v518, 16
    %v568 = vpop.permute.xlu0 %567
    %573 = vrot.lane.b32.xlu0 %v550, 24
    %v574 = vpop.permute.xlu0 %573
    %575 = vrot.lane.b32.xlu0 %v553, 24
    %v576 = vpop.permute.xlu0 %575
    %v579 = vsel %vm177, %v445, %v558
    %v580 = vsel %vm177, %v448, %v560
    %v581 = vsel %vm326, %v579, %v566
    %v582 = vsel %vm326, %v580, %v568
    %vm583 = vcmask 195584
    %v584 = vsel %vm583, %v581, %v574
    %v585 = vsel %vm583, %v582, %v576
    %v586 = vld [vmem:[%s6] sm:$0xff]
    %v587 = vld [vmem:[%s6 + $0x8] sm:$0xff]
    %v588 = vld [vmem:[%s6 + $0x10] sm:$0xff]
    %v589 = vld [vmem:[%s6 + $0x18] sm:$0xff]
    %v590 = vld [vmem:[%s7] sm:$0x1]
    %v592 = vperm.slane %v590, 0
    %v595 = vsel %vm72, %v584, 0
    %v598 = vsel %vm72, %v585, 0
    %600 = vmatpush.msra.mxu0 0.0
    %601 = vmatpush.msra.mxu0 0.0
    %602 = vmatpush.msra.mxu0 0.0
    %603 = vmatpush.msra.mxu0 0.0
    %604 = vmatpush.msra.mxu0 0.0
    %605 = vmatpush.msra.mxu0 0.0
    %606 = vmatpush.msra.mxu0 0.0
    %607 = vmatpush.msra.mxu0 0.0
    %608 = vmatpush.msra.mxu0 0.0
    %609 = vmatpush.msra.mxu0 0.0
    %610 = vmatpush.msra.mxu0 0.0
    %611 = vmatpush.msra.mxu0 0.0
    %612 = vmatpush.msra.mxu0 %v589
    %613 = vmatpush.msra.mxu0 %v588
    %614 = vmatpush.msra.mxu0 %v587
    %615 = vmatpush.msra.mxu0 %v586
    %616 = vmatmul.f32.gmra.mxu0 %v595
    %v617 = vpop.f32.mrf.mxu0
    %v618 = vadd.f32 %v592, %v617
    %619 = vmatmul.f32.gmra.mxu0 %v598
    %v620 = vpop.f32.mrf.mxu0
    %v621 = vadd.f32 %v592, %v620
    %622 = vdwg.mxu0
    %v623 = vadd.f32 %v618, %v132
    %v624 = vadd.f32 %v621, %v133
    %v625 = vld [vmem:[%s8] sm:$0x1]
    %v626 = vld [vmem:[%s9] sm:$0x1]
    %v627 = vsel %vm72, %v623, 0.0
    %628 = vadd.xlane.f32.xlu0 %v627
    %v629 = vpop.xlane.xlu0 %628
    %v630 = vsel %vm72, %v624, 0.0
    %631 = vadd.xlane.f32.xlu0 %v630
    %v632 = vpop.xlane.xlu0 %631
    %v633 = vmul.f32 %v629, %v85
    %v634 = vmul.f32 %v632, %v85
    %v635 = vsub.f32 %v623, %v633
    %v636 = vsub.f32 %v624, %v634
    %v637 = vmul.f32 %v635, %v635
    %v638 = vmul.f32 %v636, %v636
    %v639 = vsel %vm72, %v637, 0.0
    %640 = vadd.xlane.f32.xlu0 %v639
    %v641 = vpop.xlane.xlu0 %640
    %v642 = vsel %vm72, %v638, 0.0
    %643 = vadd.xlane.f32.xlu0 %v642
    %v644 = vpop.xlane.xlu0 %643
    %v645 = vmul.f32 %v641, %v85
    %v646 = vmul.f32 %v644, %v85
    %v647 = vadd.f32 %v645, 1e-12
    %v648 = vadd.f32 %v646, 1e-12
    %v649 = vrsqrt.pop %v647
    %v650 = vmul.f32 %v649, %v647
    %v651 = vmul.f32 %v650, %v649
    %v652 = vmul.f32 0.5, %v651
    %v653 = vsub.f32 1.5, %v652
    %v654 = vmul.f32 %v649, %v653
    %vm655 = vweird.f32 %v647
    %vm656 = vweird.f32 %v649
    %vm657 = vmor %vm655, %vm656
    %v658 = vsel %vm657, %v649, %v654
    %v659 = vrsqrt.pop %v648
    %v660 = vmul.f32 %v659, %v648
    %v661 = vmul.f32 %v660, %v659
    %v662 = vmul.f32 0.5, %v661
    %v663 = vsub.f32 1.5, %v662
    %v664 = vmul.f32 %v659, %v663
    %vm665 = vweird.f32 %v648
    %vm666 = vweird.f32 %v659
    %vm667 = vmor %vm665, %vm666
    %v668 = vsel %vm667, %v659, %v664
    %v669 = vmul.f32 %v635, %v658
    %v670 = vmul.f32 %v636, %v668
    %v672 = vperm.slane %v625, 0
    %v674 = vmul.f32 %v669, %v672
    %v675 = vmul.f32 %v670, %v672
    %v677 = vperm.slane %v626, 0
    %v679 = vadd.f32 %v674, %v677
    %v680 = vadd.f32 %v675, %v677
    %v681 = vld [vmem:[%s10] sm:$0xff]
    %v682 = vld [vmem:[%s10 + $0x8] sm:$0xff]
    %v683 = vld [vmem:[%s10 + $0x10] sm:$0xff]
    %v684 = vld [vmem:[%s10 + $0x18] sm:$0xff]
    %v685 = vld [vmem:[%s11] sm:$0x1]
    %v687 = vperm.slane %v685, 0
    %v690 = vsel %vm72, %v679, 0
    %v693 = vsel %vm72, %v680, 0
    %695 = vmatpush.msra.mxu0 0.0
    %696 = vmatpush.msra.mxu0 0.0
    %697 = vmatpush.msra.mxu0 0.0
    %698 = vmatpush.msra.mxu0 0.0
    %699 = vmatpush.msra.mxu0 0.0
    %700 = vmatpush.msra.mxu0 0.0
    %701 = vmatpush.msra.mxu0 0.0
    %702 = vmatpush.msra.mxu0 0.0
    %703 = vmatpush.msra.mxu0 0.0
    %704 = vmatpush.msra.mxu0 0.0
    %705 = vmatpush.msra.mxu0 0.0
    %706 = vmatpush.msra.mxu0 0.0
    %707 = vmatpush.msra.mxu0 %v684
    %708 = vmatpush.msra.mxu0 %v683
    %709 = vmatpush.msra.mxu0 %v682
    %710 = vmatpush.msra.mxu0 %v681
    %711 = vmatmul.f32.gmra.mxu0 %v690
    %v712 = vpop.f32.mrf.mxu0
    %v713 = vadd.f32 %v687, %v712
    %714 = vmatmul.f32.gmra.mxu0 %v693
    %v715 = vpop.f32.mrf.mxu0
    %v716 = vadd.f32 %v687, %v715
    %717 = vdwg.mxu0
    %v718 = vmul.f32 %v713, %v713
    %v719 = vmul.f32 %v716, %v716
    %v720 = vmul.f32 %v713, %v718
    %v721 = vmul.f32 %v716, %v719
    %v722 = vmul.f32 %v720, 0.044715
    %v723 = vmul.f32 %v721, 0.044715
    %v724 = vadd.f32 %v713, %v722
    %v725 = vadd.f32 %v716, %v723
    %v726 = vmul.f32 %v724, 0.7978846
    %v727 = vmul.f32 %v725, 0.7978846
    %v728 = vtanh.pop %v726
    %v729 = vtanh.pop %v727
    %v730 = vadd.f32 %v728, 1.0
    %v731 = vadd.f32 %v729, 1.0
    %v732 = vmul.f32 %v730, 0.5
    %v733 = vmul.f32 %v731, 0.5
    %v734 = vmul.f32 %v713, %v732
    %v735 = vmul.f32 %v716, %v733
    %v736 = vld [vmem:[%s12] sm:$0xff]
    %v737 = vld [vmem:[%s12 + $0x8] sm:$0xff]
    %v738 = vld [vmem:[%s12 + $0x10] sm:$0xff]
    %v739 = vld [vmem:[%s12 + $0x18] sm:$0xff]
    %v740 = vld [vmem:[%s12 + $0x20] sm:$0xff]
    %v741 = vld [vmem:[%s12 + $0x28] sm:$0xff]
    %v742 = vld [vmem:[%s12 + $0x30] sm:$0xff]
    %v743 = vld [vmem:[%s12 + $0x38] sm:$0xff]
    %v744 = vld [vmem:[%s13] sm:$0x1]
    %v746 = vperm.slane %v744, 0
    %vm748 = vcmask 523264
    %v750 = vsel %vm748, %v734, 0
    %v753 = vsel %vm748, %v735, 0
    %755 = vmatpush.msra.mxu0 0.0
    %756 = vmatpush.msra.mxu0 0.0
    %757 = vmatpush.msra.mxu0 0.0
    %758 = vmatpush.msra.mxu0 0.0
    %759 = vmatpush.msra.mxu0 0.0
    %760 = vmatpush.msra.mxu0 0.0
    %761 = vmatpush.msra.mxu0 0.0
    %762 = vmatpush.msra.mxu0 0.0
    %763 = vmatpush.msra.mxu0 %v743
    %764 = vmatpush.msra.mxu0 %v742
    %765 = vmatpush.msra.mxu0 %v741
    %766 = vmatpush.msra.mxu0 %v740
    %767 = vmatpush.msra.mxu0 %v739
    %768 = vmatpush.msra.mxu0 %v738
    %769 = vmatpush.msra.mxu0 %v737
    %770 = vmatpush.msra.mxu0 %v736
    %771 = vmatmul.f32.gmra.mxu0 %v750
    %v772 = vpop.f32.mrf.mxu0
    %v773 = vadd.f32 %v746, %v772
    %774 = vmatmul.f32.gmra.mxu0 %v753
    %v775 = vpop.f32.mrf.mxu0
    %v776 = vadd.f32 %v746, %v775
    %777 = vdwg.mxu0
    %v778 = vadd.f32 %v773, %v679
    %v779 = vadd.f32 %v776, %v680
    %v780 = vld [vmem:[%s14] sm:$0x1]
    %v781 = vld [vmem:[%s15] sm:$0x1]
    %v782 = vsel %vm72, %v778, 0.0
    %783 = vadd.xlane.f32.xlu0 %v782
    %v784 = vpop.xlane.xlu0 %783
    %v785 = vsel %vm72, %v779, 0.0
    %786 = vadd.xlane.f32.xlu0 %v785
    %v787 = vpop.xlane.xlu0 %786
    %v788 = vmul.f32 %v784, %v85
    %v789 = vmul.f32 %v787, %v85
    %v790 = vsub.f32 %v778, %v788
    %v791 = vsub.f32 %v779, %v789
    %v792 = vmul.f32 %v790, %v790
    %v793 = vmul.f32 %v791, %v791
    %v794 = vsel %vm72, %v792, 0.0
    %795 = vadd.xlane.f32.xlu0 %v794
    %v796 = vpop.xlane.xlu0 %795
    %v797 = vsel %vm72, %v793, 0.0
    %798 = vadd.xlane.f32.xlu0 %v797
    %v799 = vpop.xlane.xlu0 %798
    %v800 = vmul.f32 %v796, %v85
    %v801 = vmul.f32 %v799, %v85
    %v802 = vadd.f32 %v800, 1e-12
    %v803 = vadd.f32 %v801, 1e-12
    %v804 = vrsqrt.pop %v802
    %v805 = vmul.f32 %v804, %v802
    %v806 = vmul.f32 %v805, %v804
    %v807 = vmul.f32 0.5, %v806
    %v808 = vsub.f32 1.5, %v807
    %v809 = vmul.f32 %v804, %v808
    %vm810 = vweird.f32 %v802
    %vm811 = vweird.f32 %v804
    %vm812 = vmor %vm810, %vm811
    %v813 = vsel %vm812, %v804, %v809
    %v814 = vrsqrt.pop %v803
    %v815 = vmul.f32 %v814, %v803
    %v816 = vmul.f32 %v815, %v814
    %v817 = vmul.f32 0.5, %v816
    %v818 = vsub.f32 1.5, %v817
    %v819 = vmul.f32 %v814, %v818
    %vm820 = vweird.f32 %v803
    %vm821 = vweird.f32 %v814
    %vm822 = vmor %vm820, %vm821
    %v823 = vsel %vm822, %v814, %v819
    %v824 = vmul.f32 %v790, %v813
    %v825 = vmul.f32 %v791, %v823
    %v827 = vperm.slane %v780, 0
    %v829 = vmul.f32 %v824, %v827
    %v830 = vmul.f32 %v825, %v827
    %v832 = vperm.slane %v781, 0
    %v834 = vadd.f32 %v829, %v832
    %v835 = vadd.f32 %v830, %v832
    %s836 = scalar_lea.vmem %s4, 32
    %v837 = vld [vmem:[%s836] sm:$0xff]
    %v838 = vld [vmem:[%s836 + $0x8] sm:$0xff]
    %v839 = vld [vmem:[%s836 + $0x10] sm:$0xff]
    %v840 = vld [vmem:[%s836 + $0x18] sm:$0xff]
    %s841 = scalar_lea.vmem %s5, 1
    %v842 = vld [vmem:[%s841] sm:$0x1]
    %v844 = vperm.slane %v842, 0
    %v847 = vsel %vm72, %v834, 0
    %v850 = vsel %vm72, %v835, 0
    %852 = vmatpush.msra.mxu0 0.0
    %853 = vmatpush.msra.mxu0 0.0
    %854 = vmatpush.msra.mxu0 0.0
    %855 = vmatpush.msra.mxu0 0.0
    %856 = vmatpush.msra.mxu0 0.0
    %857 = vmatpush.msra.mxu0 0.0
    %858 = vmatpush.msra.mxu0 0.0
    %859 = vmatpush.msra.mxu0 0.0
    %860 = vmatpush.msra.mxu0 0.0
    %861 = vmatpush.msra.mxu0 0.0
    %862 = vmatpush.msra.mxu0 0.0
    %863 = vmatpush.msra.mxu0 0.0
    %864 = vmatpush.msra.mxu0 %v840
    %865 = vmatpush.msra.mxu0 %v839
    %866 = vmatpush.msra.mxu0 %v838
    %867 = vmatpush.msra.mxu0 %v837
    %868 = vmatmul.f32.gmra.mxu0 %v847
    %v869 = vpop.f32.mrf.mxu0
    %v870 = vadd.f32 %v844, %v869
    %871 = vmatmul.f32.gmra.mxu0 %v850
    %v872 = vpop.f32.mrf.mxu0
    %v873 = vadd.f32 %v844, %v872
    %874 = vdwg.mxu0
    %877 = vrot.lane.b32.xlu0 %v870, 96
    %v878 = vpop.permute.xlu0 %877
    %879 = vrot.lane.b32.xlu0 %v873, 96
    %v880 = vpop.permute.xlu0 %879
    %v881 = vsel %vm177, %v870, 0
    %v883 = vsel %vm177, %v873, 0
    %v885 = vsel %vm177, %v878, 0
    %v887 = vsel %vm177, %v880, 0
    %889 = vmatpush.xpose.msra.mxu0 0.0
    %890 = vmatpush.xpose.msra.mxu0 0.0
    %891 = vmatpush.xpose.msra.mxu0 0.0
    %892 = vmatpush.xpose.msra.mxu0 0.0
    %893 = vmatpush.xpose.msra.mxu0 0.0
    %894 = vmatpush.xpose.msra.mxu0 0.0
    %895 = vmatpush.xpose.msra.mxu0 0.0
    %896 = vmatpush.xpose.msra.mxu0 0.0
    %897 = vmatpush.xpose.msra.mxu0 0.0
    %898 = vmatpush.xpose.msra.mxu0 0.0
    %899 = vmatpush.xpose.msra.mxu0 0.0
    %900 = vmatpush.xpose.msra.mxu0 0.0
    %901 = vmatpush.xpose.msra.mxu0 0.0
    %902 = vmatpush.xpose.msra.mxu0 0.0
    %903 = vmatpush.xpose.msra.mxu0 %v887
    %904 = vmatpush.xpose.msra.mxu0 %v885
    %905 = vmatmul.f32.gmra.mxu0 %v881
    %v906 = vpop.f32.mrf.mxu0
    %v907 = vadd.f32 %v66, %v906
    %908 = vmatmul.f32.gmra.mxu0 %v883
    %v909 = vpop.f32.mrf.mxu0
    %v910 = vadd.f32 %v67, %v909
    %911 = vdwg.mxu0
    %912 = vrot.lane.b32.xlu0 %v870, 120
    %v913 = vpop.permute.xlu0 %912
    %914 = vrot.lane.b32.xlu0 %v873, 120
    %v915 = vpop.permute.xlu0 %914
    %916 = vrot.lane.b32.xlu0 %v870, 88
    %v917 = vpop.permute.xlu0 %916
    %918 = vrot.lane.b32.xlu0 %v873, 88
    %v919 = vpop.permute.xlu0 %918
    %v920 = vsel %vm177, %v913, 0
    %v922 = vsel %vm177, %v915, 0
    %v924 = vsel %vm177, %v917, 0
    %v926 = vsel %vm177, %v919, 0
    %928 = vmatpush.xpose.msra.mxu0 0.0
    %929 = vmatpush.xpose.msra.mxu0 0.0
    %930 = vmatpush.xpose.msra.mxu0 0.0
    %931 = vmatpush.xpose.msra.mxu0 0.0
    %932 = vmatpush.xpose.msra.mxu0 0.0
    %933 = vmatpush.xpose.msra.mxu0 0.0
    %934 = vmatpush.xpose.msra.mxu0 0.0
    %935 = vmatpush.xpose.msra.mxu0 0.0
    %936 = vmatpush.xpose.msra.mxu0 0.0
    %937 = vmatpush.xpose.msra.mxu0 0.0
    %938 = vmatpush.xpose.msra.mxu0 0.0
    %939 = vmatpush.xpose.msra.mxu0 0.0
    %940 = vmatpush.xpose.msra.mxu0 0.0
    %941 = vmatpush.xpose.msra.mxu0 0.0
    %942 = vmatpush.xpose.msra.mxu0 %v926
    %943 = vmatpush.xpose.msra.mxu0 %v924
    %944 = vmatmul.f32.gmra.mxu0 %v920
    %v945 = vpop.f32.mrf.mxu0
    %v946 = vadd.f32 %v66, %v945
    %947 = vmatmul.f32.gmra.mxu0 %v922
    %v948 = vpop.f32.mrf.mxu0
    %v949 = vadd.f32 %v67, %v948
    %950 = vdwg.mxu0
    %951 = vrot.lane.b32.xlu0 %v870, 112
    %v952 = vpop.permute.xlu0 %951
    %953 = vrot.lane.b32.xlu0 %v873, 112
    %v954 = vpop.permute.xlu0 %953
    %955 = vrot.lane.b32.xlu0 %v870, 80
    %v956 = vpop.permute.xlu0 %955
    %957 = vrot.lane.b32.xlu0 %v873, 80
    %v958 = vpop.permute.xlu0 %957
    %v959 = vsel %vm177, %v952, 0
    %v961 = vsel %vm177, %v954, 0
    %v963 = vsel %vm177, %v956, 0
    %v965 = vsel %vm177, %v958, 0
    %967 = vmatpush.xpose.msra.mxu0 0.0
    %968 = vmatpush.xpose.msra.mxu0 0.0
    %969 = vmatpush.xpose.msra.mxu0 0.0
    %970 = vmatpush.xpose.msra.mxu0 0.0
    %971 = vmatpush.xpose.msra.mxu0 0.0
    %972 = vmatpush.xpose.msra.mxu0 0.0
    %973 = vmatpush.xpose.msra.mxu0 0.0
    %974 = vmatpush.xpose.msra.mxu0 0.0
    %975 = vmatpush.xpose.msra.mxu0 0.0
    %976 = vmatpush.xpose.msra.mxu0 0.0
    %977 = vmatpush.xpose.msra.mxu0 0.0
    %978 = vmatpush.xpose.msra.mxu0 0.0
    %979 = vmatpush.xpose.msra.mxu0 0.0
    %980 = vmatpush.xpose.msra.mxu0 0.0
    %981 = vmatpush.xpose.msra.mxu0 %v965
    %982 = vmatpush.xpose.msra.mxu0 %v963
    %983 = vmatmul.f32.gmra.mxu0 %v959
    %v984 = vpop.f32.mrf.mxu0
    %v985 = vadd.f32 %v66, %v984
    %986 = vmatmul.f32.gmra.mxu0 %v961
    %v987 = vpop.f32.mrf.mxu0
    %v988 = vadd.f32 %v67, %v987
    %989 = vdwg.mxu0
    %990 = vrot.lane.b32.xlu0 %v870, 104
    %v991 = vpop.permute.xlu0 %990
    %992 = vrot.lane.b32.xlu0 %v873, 104
    %v993 = vpop.permute.xlu0 %992
    %994 = vrot.lane.b32.xlu0 %v870, 72
    %v995 = vpop.permute.xlu0 %994
    %996 = vrot.lane.b32.xlu0 %v873, 72
    %v997 = vpop.permute.xlu0 %996
    %v998 = vsel %vm177, %v991, 0
    %v1000 = vsel %vm177, %v993, 0
    %v1002 = vsel %vm177, %v995, 0
    %v1004 = vsel %vm177, %v997, 0
    %1006 = vmatpush.xpose.msra.mxu0 0.0
    %1007 = vmatpush.xpose.msra.mxu0 0.0
    %1008 = vmatpush.xpose.msra.mxu0 0.0
    %1009 = vmatpush.xpose.msra.mxu0 0.0
    %1010 = vmatpush.xpose.msra.mxu0 0.0
    %1011 = vmatpush.xpose.msra.mxu0 0.0
    %1012 = vmatpush.xpose.msra.mxu0 0.0
    %1013 = vmatpush.xpose.msra.mxu0 0.0
    %1014 = vmatpush.xpose.msra.mxu0 0.0
    %1015 = vmatpush.xpose.msra.mxu0 0.0
    %1016 = vmatpush.xpose.msra.mxu0 0.0
    %1017 = vmatpush.xpose.msra.mxu0 0.0
    %1018 = vmatpush.xpose.msra.mxu0 0.0
    %1019 = vmatpush.xpose.msra.mxu0 0.0
    %1020 = vmatpush.xpose.msra.mxu0 %v1004
    %1021 = vmatpush.xpose.msra.mxu0 %v1002
    %1022 = vmatmul.f32.gmra.mxu0 %v998
    %v1023 = vpop.f32.mrf.mxu0
    %v1024 = vadd.f32 %v66, %v1023
    %1025 = vmatmul.f32.gmra.mxu0 %v1000
    %v1026 = vpop.f32.mrf.mxu0
    %v1027 = vadd.f32 %v67, %v1026
    %1028 = vdwg.mxu0
    %v1029 = vsel %vm326, %v907, -inf
    %1030 = vmax.xlane.f32.xlu0 %v1029
    %v1031 = vpop.xlane.xlu0 %1030
    %v1032 = vsel %vm326, %v910, -inf
    %1033 = vmax.xlane.f32.xlu0 %v1032
    %v1034 = vpop.xlane.xlu0 %1033
    %v1035 = vsel %vm326, %v946, -inf
    %1036 = vmax.xlane.f32.xlu0 %v1035
    %v1037 = vpop.xlane.xlu0 %1036
    %v1038 = vsel %vm326, %v949, -inf
    %1039 = vmax.xlane.f32.xlu0 %v1038
    %v1040 = vpop.xlane.xlu0 %1039
    %v1041 = vsel %vm326, %v985, -inf
    %1042 = vmax.xlane.f32.xlu0 %v1041
    %v1043 = vpop.xlane.xlu0 %1042
    %v1044 = vsel %vm326, %v988, -inf
    %1045 = vmax.xlane.f32.xlu0 %v1044
    %v1046 = vpop.xlane.xlu0 %1045
    %v1047 = vsel %vm326, %v1024, -inf
    %1048 = vmax.xlane.f32.xlu0 %v1047
    %v1049 = vpop.xlane.xlu0 %1048
    %v1050 = vsel %vm326, %v1027, -inf
    %1051 = vmax.xlane.f32.xlu0 %v1050
    %v1052 = vpop.xlane.xlu0 %1051
    %v1053 = vsub.f32 %v907, %v1031
    %v1054 = vsub.f32 %v910, %v1034
    %v1055 = vsub.f32 %v946, %v1037
    %v1056 = vsub.f32 %v949, %v1040
    %v1057 = vsub.f32 %v985, %v1043
    %v1058 = vsub.f32 %v988, %v1046
    %v1059 = vsub.f32 %v1024, %v1049
    %v1060 = vsub.f32 %v1027, %v1052
    %v1061 = vmul.f32 %v1053, 1.442695
    %v1062 = vpow.pop %v1061
    %v1063 = vmul.f32 %v1054, 1.442695
    %v1064 = vpow.pop %v1063
    %v1065 = vmul.f32 %v1055, 1.442695
    %v1066 = vpow.pop %v1065
    %v1067 = vmul.f32 %v1056, 1.442695
    %v1068 = vpow.pop %v1067
    %v1069 = vmul.f32 %v1057, 1.442695
    %v1070 = vpow.pop %v1069
    %v1071 = vmul.f32 %v1058, 1.442695
    %v1072 = vpow.pop %v1071
    %v1073 = vmul.f32 %v1059, 1.442695
    %v1074 = vpow.pop %v1073
    %v1075 = vmul.f32 %v1060, 1.442695
    %v1076 = vpow.pop %v1075
    %v1077 = vsel %vm326, %v1062, 0.0
    %1078 = vadd.xlane.f32.xlu0 %v1077
    %v1079 = vpop.xlane.xlu0 %1078
    %v1080 = vsel %vm326, %v1064, 0.0
    %1081 = vadd.xlane.f32.xlu0 %v1080
    %v1082 = vpop.xlane.xlu0 %1081
    %v1083 = vsel %vm326, %v1066, 0.0
    %1084 = vadd.xlane.f32.xlu0 %v1083
    %v1085 = vpop.xlane.xlu0 %1084
    %v1086 = vsel %vm326, %v1068, 0.0
    %1087 = vadd.xlane.f32.xlu0 %v1086
    %v1088 = vpop.xlane.xlu0 %1087
    %v1089 = vsel %vm326, %v1070, 0.0
    %1090 = vadd.xlane.f32.xlu0 %v1089
    %v1091 = vpop.xlane.xlu0 %1090
    %v1092 = vsel %vm326, %v1072, 0.0
    %1093 = vadd.xlane.f32.xlu0 %v1092
    %v1094 = vpop.xlane.xlu0 %1093
    %v1095 = vsel %vm326, %v1074, 0.0
    %1096 = vadd.xlane.f32.xlu0 %v1095
    %v1097 = vpop.xlane.xlu0 %1096
    %v1098 = vsel %vm326, %v1076, 0.0
    %1099 = vadd.xlane.f32.xlu0 %v1098
    %v1100 = vpop.xlane.xlu0 %1099
    %v1101 = vrcp.pop %v1079
    %v1102 = vrcp.pop %v1082
    %v1103 = vrcp.pop %v1085
    %v1104 = vrcp.pop %v1088
    %v1105 = vrcp.pop %v1091
    %v1106 = vrcp.pop %v1094
    %v1107 = vrcp.pop %v1097
    %v1108 = vrcp.pop %v1100
    %v1109 = vmul.f32 %v1062, %v1101
    %v1110 = vmul.f32 %v1064, %v1102
    %v1111 = vmul.f32 %v1066, %v1103
    %v1112 = vmul.f32 %v1068, %v1104
    %v1113 = vmul.f32 %v1070, %v1105
    %v1114 = vmul.f32 %v1072, %v1106
    %v1115 = vmul.f32 %v1074, %v1107
    %v1116 = vmul.f32 %v1076, %v1108
    %1117 = vrot.lane.b32.xlu0 %v870, 64
    %v1118 = vpop.permute.xlu0 %1117
    %1119 = vrot.lane.b32.xlu0 %v873, 64
    %v1120 = vpop.permute.xlu0 %1119
    %v1124 = vsel %vm326, %v1109, 0
    %v1127 = vsel %vm326, %v1110, 0
    %1129 = vmatpush.msra.mxu0 0.0
    %1130 = vmatpush.msra.mxu0 0.0
    %1131 = vmatpush.msra.mxu0 0.0
    %1132 = vmatpush.msra.mxu0 0.0
    %1133 = vmatpush.msra.mxu0 0.0
    %1134 = vmatpush.msra.mxu0 0.0
    %1135 = vmatpush.msra.mxu0 0.0
    %1136 = vmatpush.msra.mxu0 0.0
    %1137 = vmatpush.msra.mxu0 0.0
    %1138 = vmatpush.msra.mxu0 0.0
    %1139 = vmatpush.msra.mxu0 0.0
    %1140 = vmatpush.msra.mxu0 0.0
    %1141 = vmatpush.msra.mxu0 0.0
    %1142 = vmatpush.msra.mxu0 0.0
    %1143 = vmatpush.msra.mxu0 %v1120
    %1144 = vmatpush.msra.mxu0 %v1118
    %1145 = vmatmul.f32.gmra.mxu0 %v1124
    %v1146 = vpop.f32.mrf.mxu0
    %v1147 = vadd.f32 0.0, %v1146
    %1148 = vmatmul.f32.gmra.mxu0 %v1127
    %v1149 = vpop.f32.mrf.mxu0
    %v1150 = vadd.f32 0.0, %v1149
    %1151 = vdwg.mxu0
    %1152 = vrot.lane.b32.xlu0 %v870, 56
    %v1153 = vpop.permute.xlu0 %1152
    %1154 = vrot.lane.b32.xlu0 %v873, 56
    %v1155 = vpop.permute.xlu0 %1154
    %v1159 = vsel %vm326, %v1111, 0
    %v1162 = vsel %vm326, %v1112, 0
    %1164 = vmatpush.msra.mxu0 0.0
    %1165 = vmatpush.msra.mxu0 0.0
    %1166 = vmatpush.msra.mxu0 0.0
    %1167 = vmatpush.msra.mxu0 0.0
    %1168 = vmatpush.msra.mxu0 0.0
    %1169 = vmatpush.msra.mxu0 0.0
    %1170 = vmatpush.msra.mxu0 0.0
    %1171 = vmatpush.msra.mxu0 0.0
    %1172 = vmatpush.msra.mxu0 0.0
    %1173 = vmatpush.msra.mxu0 0.0
    %1174 = vmatpush.msra.mxu0 0.0
    %1175 = vmatpush.msra.mxu0 0.0
    %1176 = vmatpush.msra.mxu0 0.0
    %1177 = vmatpush.msra.mxu0 0.0
    %1178 = vmatpush.msra.mxu0 %v1155
    %1179 = vmatpush.msra.mxu0 %v1153
    %1180 = vmatmul.f32.gmra.mxu0 %v1159
    %v1181 = vpop.f32.mrf.mxu0
    %v1182 = vadd.f32 0.0, %v1181
    %1183 = vmatmul.f32.gmra.mxu0 %v1162
    %v1184 = vpop.f32.mrf.mxu0
    %v1185 = vadd.f32 0.0, %v1184
    %1186 = vdwg.mxu0
    %1187 = vrot.lane.b32.xlu0 %v870, 48
    %v1188 = vpop.permute.xlu0 %1187
    %1189 = vrot.lane.b32.xlu0 %v873, 48
    %v1190 = vpop.permute.xlu0 %1189
    %v1194 = vsel %vm326, %v1113, 0
    %v1197 = vsel %vm326, %v1114, 0
    %1199 = vmatpush.msra.mxu0 0.0
    %1200 = vmatpush.msra.mxu0 0.0
    %1201 = vmatpush.msra.mxu0 0.0
    %1202 = vmatpush.msra.mxu0 0.0
    %1203 = vmatpush.msra.mxu0 0.0
    %1204 = vmatpush.msra.mxu0 0.0
    %1205 = vmatpush.msra.mxu0 0.0
    %1206 = vmatpush.msra.mxu0 0.0
    %1207 = vmatpush.msra.mxu0 0.0
    %1208 = vmatpush.msra.mxu0 0.0
    %1209 = vmatpush.msra.mxu0 0.0
    %1210 = vmatpush.msra.mxu0 0.0
    %1211 = vmatpush.msra.mxu0 0.0
    %1212 = vmatpush.msra.mxu0 0.0
    %1213 = vmatpush.msra.mxu0 %v1190
    %1214 = vmatpush.msra.mxu0 %v1188
    %1215 = vmatmul.f32.gmra.mxu0 %v1194
    %v1216 = vpop.f32.mrf.mxu0
    %v1217 = vadd.f32 0.0, %v1216
    %1218 = vmatmul.f32.gmra.mxu0 %v1197
    %v1219 = vpop.f32.mrf.mxu0
    %v1220 = vadd.f32 0.0, %v1219
    %1221 = vdwg.mxu0
    %1222 = vrot.lane.b32.xlu0 %v870, 40
    %v1223 = vpop.permute.xlu0 %1222
    %1224 = vrot.lane.b32.xlu0 %v873, 40
    %v1225 = vpop.permute.xlu0 %1224
    %v1229 = vsel %vm326, %v1115, 0
    %v1232 = vsel %vm326, %v1116, 0
    %1234 = vmatpush.msra.mxu0 0.0
    %1235 = vmatpush.msra.mxu0 0.0
    %1236 = vmatpush.msra.mxu0 0.0
    %1237 = vmatpush.msra.mxu0 0.0
    %1238 = vmatpush.msra.mxu0 0.0
    %1239 = vmatpush.msra.mxu0 0.0
    %1240 = vmatpush.msra.mxu0 0.0
    %1241 = vmatpush.msra.mxu0 0.0
    %1242 = vmatpush.msra.mxu0 0.0
    %1243 = vmatpush.msra.mxu0 0.0
    %1244 = vmatpush.msra.mxu0 0.0
    %1245 = vmatpush.msra.mxu0 0.0
    %1246 = vmatpush.msra.mxu0 0.0
    %1247 = vmatpush.msra.mxu0 0.0
    %1248 = vmatpush.msra.mxu0 %v1225
    %1249 = vmatpush.msra.mxu0 %v1223
    %1250 = vmatmul.f32.gmra.mxu0 %v1229
    %v1251 = vpop.f32.mrf.mxu0
    %v1252 = vadd.f32 0.0, %v1251
    %1253 = vmatmul.f32.gmra.mxu0 %v1232
    %v1254 = vpop.f32.mrf.mxu0
    %v1255 = vadd.f32 0.0, %v1254
    %1256 = vdwg.mxu0
    %1259 = vrot.lane.b32.xlu0 %v1182, 8
    %v1260 = vpop.permute.xlu0 %1259
    %1261 = vrot.lane.b32.xlu0 %v1185, 8
    %v1262 = vpop.permute.xlu0 %1261
    %1267 = vrot.lane.b32.xlu0 %v1217, 16
    %v1268 = vpop.permute.xlu0 %1267
    %1269 = vrot.lane.b32.xlu0 %v1220, 16
    %v1270 = vpop.permute.xlu0 %1269
    %1275 = vrot.lane.b32.xlu0 %v1252, 24
    %v1276 = vpop.permute.xlu0 %1275
    %1277 = vrot.lane.b32.xlu0 %v1255, 24
    %v1278 = vpop.permute.xlu0 %1277
    %v1281 = vsel %vm177, %v1147, %v1260
    %v1282 = vsel %vm177, %v1150, %v1262
    %v1283 = vsel %vm326, %v1281, %v1268
    %v1284 = vsel %vm326, %v1282, %v1270
    %v1285 = vsel %vm583, %v1283, %v1276
    %v1286 = vsel %vm583, %v1284, %v1278
    %s1287 = scalar_lea.vmem %s6, 32
    %v1288 = vld [vmem:[%s1287] sm:$0xff]
    %v1289 = vld [vmem:[%s1287 + $0x8] sm:$0xff]
    %v1290 = vld [vmem:[%s1287 + $0x10] sm:$0xff]
    %v1291 = vld [vmem:[%s1287 + $0x18] sm:$0xff]
    %s1292 = scalar_lea.vmem %s7, 1
    %v1293 = vld [vmem:[%s1292] sm:$0x1]
    %v1295 = vperm.slane %v1293, 0
    %v1298 = vsel %vm72, %v1285, 0
    %v1301 = vsel %vm72, %v1286, 0
    %1303 = vmatpush.msra.mxu0 0.0
    %1304 = vmatpush.msra.mxu0 0.0
    %1305 = vmatpush.msra.mxu0 0.0
    %1306 = vmatpush.msra.mxu0 0.0
    %1307 = vmatpush.msra.mxu0 0.0
    %1308 = vmatpush.msra.mxu0 0.0
    %1309 = vmatpush.msra.mxu0 0.0
    %1310 = vmatpush.msra.mxu0 0.0
    %1311 = vmatpush.msra.mxu0 0.0
    %1312 = vmatpush.msra.mxu0 0.0
    %1313 = vmatpush.msra.mxu0 0.0
    %1314 = vmatpush.msra.mxu0 0.0
    %1315 = vmatpush.msra.mxu0 %v1291
    %1316 = vmatpush.msra.mxu0 %v1290
    %1317 = vmatpush.msra.mxu0 %v1289
    %1318 = vmatpush.msra.mxu0 %v1288
    %1319 = vmatmul.f32.gmra.mxu0 %v1298
    %v1320 = vpop.f32.mrf.mxu0
    %v1321 = vadd.f32 %v1295, %v1320
    %1322 = vmatmul.f32.gmra.mxu0 %v1301
    %v1323 = vpop.f32.mrf.mxu0
    %v1324 = vadd.f32 %v1295, %v1323
    %1325 = vdwg.mxu0
    %v1326 = vadd.f32 %v1321, %v834
    %v1327 = vadd.f32 %v1324, %v835
    %s1328 = scalar_lea.vmem %s8, 1
    %v1329 = vld [vmem:[%s1328] sm:$0x1]
    %s1330 = scalar_lea.vmem %s9, 1
    %v1331 = vld [vmem:[%s1330] sm:$0x1]
    %v1332 = vsel %vm72, %v1326, 0.0
    %1333 = vadd.xlane.f32.xlu0 %v1332
    %v1334 = vpop.xlane.xlu0 %1333
    %v1335 = vsel %vm72, %v1327, 0.0
    %1336 = vadd.xlane.f32.xlu0 %v1335
    %v1337 = vpop.xlane.xlu0 %1336
    %v1338 = vmul.f32 %v1334, %v85
    %v1339 = vmul.f32 %v1337, %v85
    %v1340 = vsub.f32 %v1326, %v1338
    %v1341 = vsub.f32 %v1327, %v1339
    %v1342 = vmul.f32 %v1340, %v1340
    %v1343 = vmul.f32 %v1341, %v1341
    %v1344 = vsel %vm72, %v1342, 0.0
    %1345 = vadd.xlane.f32.xlu0 %v1344
    %v1346 = vpop.xlane.xlu0 %1345
    %v1347 = vsel %vm72, %v1343, 0.0
    %1348 = vadd.xlane.f32.xlu0 %v1347
    %v1349 = vpop.xlane.xlu0 %1348
    %v1350 = vmul.f32 %v1346, %v85
    %v1351 = vmul.f32 %v1349, %v85
    %v1352 = vadd.f32 %v1350, 1e-12
    %v1353 = vadd.f32 %v1351, 1e-12
    %v1354 = vrsqrt.pop %v1352
    %v1355 = vmul.f32 %v1354, %v1352
    %v1356 = vmul.f32 %v1355, %v1354
    %v1357 = vmul.f32 0.5, %v1356
    %v1358 = vsub.f32 1.5, %v1357
    %v1359 = vmul.f32 %v1354, %v1358
    %vm1360 = vweird.f32 %v1352
    %vm1361 = vweird.f32 %v1354
    %vm1362 = vmor %vm1360, %vm1361
    %v1363 = vsel %vm1362, %v1354, %v1359
    %v1364 = vrsqrt.pop %v1353
    %v1365 = vmul.f32 %v1364, %v1353
    %v1366 = vmul.f32 %v1365, %v1364
    %v1367 = vmul.f32 0.5, %v1366
    %v1368 = vsub.f32 1.5, %v1367
    %v1369 = vmul.f32 %v1364, %v1368
    %vm1370 = vweird.f32 %v1353
    %vm1371 = vweird.f32 %v1364
    %vm1372 = vmor %vm1370, %vm1371
    %v1373 = vsel %vm1372, %v1364, %v1369
    %v1374 = vmul.f32 %v1340, %v1363
    %v1375 = vmul.f32 %v1341, %v1373
    %v1377 = vperm.slane %v1329, 0
    %v1379 = vmul.f32 %v1374, %v1377
    %v1380 = vmul.f32 %v1375, %v1377
    %v1382 = vperm.slane %v1331, 0
    %v1384 = vadd.f32 %v1379, %v1382
    %v1385 = vadd.f32 %v1380, %v1382
    %s1386 = scalar_lea.vmem %s10, 32
    %v1387 = vld [vmem:[%s1386] sm:$0xff]
    %v1388 = vld [vmem:[%s1386 + $0x8] sm:$0xff]
    %v1389 = vld [vmem:[%s1386 + $0x10] sm:$0xff]
    %v1390 = vld [vmem:[%s1386 + $0x18] sm:$0xff]
    %s1391 = scalar_lea.vmem %s11, 1
    %v1392 = vld [vmem:[%s1391] sm:$0x1]
    %v1394 = vperm.slane %v1392, 0
    %v1397 = vsel %vm72, %v1384, 0
    %v1400 = vsel %vm72, %v1385, 0
    %1402 = vmatpush.msra.mxu0 0.0
    %1403 = vmatpush.msra.mxu0 0.0
    %1404 = vmatpush.msra.mxu0 0.0
    %1405 = vmatpush.msra.mxu0 0.0
    %1406 = vmatpush.msra.mxu0 0.0
    %1407 = vmatpush.msra.mxu0 0.0
    %1408 = vmatpush.msra.mxu0 0.0
    %1409 = vmatpush.msra.mxu0 0.0
    %1410 = vmatpush.msra.mxu0 0.0
    %1411 = vmatpush.msra.mxu0 0.0
    %1412 = vmatpush.msra.mxu0 0.0
    %1413 = vmatpush.msra.mxu0 0.0
    %1414 = vmatpush.msra.mxu0 %v1390
    %1415 = vmatpush.msra.mxu0 %v1389
    %1416 = vmatpush.msra.mxu0 %v1388
    %1417 = vmatpush.msra.mxu0 %v1387
    %1418 = vmatmul.f32.gmra.mxu0 %v1397
    %v1419 = vpop.f32.mrf.mxu0
    %v1420 = vadd.f32 %v1394, %v1419
    %1421 = vmatmul.f32.gmra.mxu0 %v1400
    %v1422 = vpop.f32.mrf.mxu0
    %v1423 = vadd.f32 %v1394, %v1422
    %1424 = vdwg.mxu0
    %v1425 = vmul.f32 %v1420, %v1420
    %v1426 = vmul.f32 %v1423, %v1423
    %v1427 = vmul.f32 %v1420, %v1425
    %v1428 = vmul.f32 %v1423, %v1426
    %v1429 = vmul.f32 %v1427, 0.044715
    %v1430 = vmul.f32 %v1428, 0.044715
    %v1431 = vadd.f32 %v1420, %v1429
    %v1432 = vadd.f32 %v1423, %v1430
    %v1433 = vmul.f32 %v1431, 0.7978846
    %v1434 = vmul.f32 %v1432, 0.7978846
    %v1435 = vtanh.pop %v1433
    %v1436 = vtanh.pop %v1434
    %v1437 = vadd.f32 %v1435, 1.0
    %v1438 = vadd.f32 %v1436, 1.0
    %v1439 = vmul.f32 %v1437, 0.5
    %v1440 = vmul.f32 %v1438, 0.5
    %v1441 = vmul.f32 %v1420, %v1439
    %v1442 = vmul.f32 %v1423, %v1440
    %s1443 = scalar_lea.vmem %s12, 64
    %v1444 = vld [vmem:[%s1443] sm:$0xff]
    %v1445 = vld [vmem:[%s1443 + $0x8] sm:$0xff]
    %v1446 = vld [vmem:[%s1443 + $0x10] sm:$0xff]
    %v1447 = vld [vmem:[%s1443 + $0x18] sm:$0xff]
    %v1448 = vld [vmem:[%s1443 + $0x20] sm:$0xff]
    %v1449 = vld [vmem:[%s1443 + $0x28] sm:$0xff]
    %v1450 = vld [vmem:[%s1443 + $0x30] sm:$0xff]
    %v1451 = vld [vmem:[%s1443 + $0x38] sm:$0xff]
    %s1452 = scalar_lea.vmem %s13, 1
    %v1453 = vld [vmem:[%s1452] sm:$0x1]
    %v1455 = vperm.slane %v1453, 0
    %v1458 = vsel %vm748, %v1441, 0
    %v1461 = vsel %vm748, %v1442, 0
    %1463 = vmatpush.msra.mxu0 0.0
    %1464 = vmatpush.msra.mxu0 0.0
    %1465 = vmatpush.msra.mxu0 0.0
    %1466 = vmatpush.msra.mxu0 0.0
    %1467 = vmatpush.msra.mxu0 0.0
    %1468 = vmatpush.msra.mxu0 0.0
    %1469 = vmatpush.msra.mxu0 0.0
    %1470 = vmatpush.msra.mxu0 0.0
    %1471 = vmatpush.msra.mxu0 %v1451
    %1472 = vmatpush.msra.mxu0 %v1450
    %1473 = vmatpush.msra.mxu0 %v1449
    %1474 = vmatpush.msra.mxu0 %v1448
    %1475 = vmatpush.msra.mxu0 %v1447
    %1476 = vmatpush.msra.mxu0 %v1446
    %1477 = vmatpush.msra.mxu0 %v1445
    %1478 = vmatpush.msra.mxu0 %v1444
    %1479 = vmatmul.f32.gmra.mxu0 %v1458
    %v1480 = vpop.f32.mrf.mxu0
    %v1481 = vadd.f32 %v1455, %v1480
    %1482 = vmatmul.f32.gmra.mxu0 %v1461
    %v1483 = vpop.f32.mrf.mxu0
    %v1484 = vadd.f32 %v1455, %v1483
    %1485 = vdwg.mxu0
    %v1486 = vadd.f32 %v1481, %v1384
    %v1487 = vadd.f32 %v1484, %v1385
    %s1488 = scalar_lea.vmem %s14, 1
    %v1489 = vld [vmem:[%s1488] sm:$0x1]
    %s1490 = scalar_lea.vmem %s15, 1
    %v1491 = vld [vmem:[%s1490] sm:$0x1]
    %v1492 = vsel %vm72, %v1486, 0.0
    %1493 = vadd.xlane.f32.xlu0 %v1492
    %v1494 = vpop.xlane.xlu0 %1493
    %v1495 = vsel %vm72, %v1487, 0.0
    %1496 = vadd.xlane.f32.xlu0 %v1495
    %v1497 = vpop.xlane.xlu0 %1496
    %v1498 = vmul.f32 %v1494, %v85
    %v1499 = vmul.f32 %v1497, %v85
    %v1500 = vsub.f32 %v1486, %v1498
    %v1501 = vsub.f32 %v1487, %v1499
    %v1502 = vmul.f32 %v1500, %v1500
    %v1503 = vmul.f32 %v1501, %v1501
    %v1504 = vsel %vm72, %v1502, 0.0
    %1505 = vadd.xlane.f32.xlu0 %v1504
    %v1506 = vpop.xlane.xlu0 %1505
    %v1507 = vsel %vm72, %v1503, 0.0
    %1508 = vadd.xlane.f32.xlu0 %v1507
    %v1509 = vpop.xlane.xlu0 %1508
    %v1510 = vmul.f32 %v1506, %v85
    %v1511 = vmul.f32 %v1509, %v85
    %v1512 = vadd.f32 %v1510, 1e-12
    %v1513 = vadd.f32 %v1511, 1e-12
    %v1514 = vrsqrt.pop %v1512
    %v1515 = vmul.f32 %v1514, %v1512
    %v1516 = vmul.f32 %v1515, %v1514
    %v1517 = vmul.f32 0.5, %v1516
    %v1518 = vsub.f32 1.5, %v1517
    %v1519 = vmul.f32 %v1514, %v1518
    %vm1520 = vweird.f32 %v1512
    %vm1521 = vweird.f32 %v1514
    %vm1522 = vmor %vm1520, %vm1521
    %v1523 = vsel %vm1522, %v1514, %v1519
    %v1524 = vrsqrt.pop %v1513
    %v1525 = vmul.f32 %v1524, %v1513
    %v1526 = vmul.f32 %v1525, %v1524
    %v1527 = vmul.f32 0.5, %v1526
    %v1528 = vsub.f32 1.5, %v1527
    %v1529 = vmul.f32 %v1524, %v1528
    %vm1530 = vweird.f32 %v1513
    %vm1531 = vweird.f32 %v1524
    %vm1532 = vmor %vm1530, %vm1531
    %v1533 = vsel %vm1532, %v1524, %v1529
    %v1534 = vmul.f32 %v1500, %v1523
    %v1535 = vmul.f32 %v1501, %v1533
    %v1537 = vperm.slane %v1489, 0
    %v1539 = vmul.f32 %v1534, %v1537
    %v1540 = vmul.f32 %v1535, %v1537
    %v1542 = vperm.slane %v1491, 0
    %v1544 = vadd.f32 %v1539, %v1542
    %v1545 = vadd.f32 %v1540, %v1542
    %v1546 = vlaneseq
    %v1547 = vshrl.u32 %v1546, 7
    %v1548 = vmul.u32 %v1547, 8
    %v1549 = vlaneseq
    %v1550 = vand.u32 %v1549, 127
    %vm1551 = vcmp.eq.s32.totalorder %v1548, %v1550
    %v1552 = vsel %vm1551, 1, 0
    %v1553 = vcvt.s32.f32 %v1552
    %v1555 = vsel %vm326, %v1553, 0
    %1557 = vmatpush.msra.mxu0 0.0
    %1558 = vmatpush.msra.mxu0 0.0
    %1559 = vmatpush.msra.mxu0 0.0
    %1560 = vmatpush.msra.mxu0 0.0
    %1561 = vmatpush.msra.mxu0 0.0
    %1562 = vmatpush.msra.mxu0 0.0
    %1563 = vmatpush.msra.mxu0 0.0
    %1564 = vmatpush.msra.mxu0 0.0
    %1565 = vmatpush.msra.mxu0 0.0
    %1566 = vmatpush.msra.mxu0 0.0
    %1567 = vmatpush.msra.mxu0 0.0
    %1568 = vmatpush.msra.mxu0 0.0
    %1569 = vmatpush.msra.mxu0 0.0
    %1570 = vmatpush.msra.mxu0 0.0
    %1571 = vmatpush.msra.mxu0 %v1545
    %1572 = vmatpush.msra.mxu0 %v1544
    %1573 = vmatmul.f32.gmra.mxu0 %v1555
    %v1574 = vpop.f32.mrf.mxu0
    %v1575 = vadd.f32 0.0, %v1574
    %1576 = vdwg.mxu0
    %v1577 = vld [vmem:[%s16] sm:$0xff]
    %v1578 = vld [vmem:[%s16 + $0x8] sm:$0xff]
    %v1579 = vld [vmem:[%s16 + $0x10] sm:$0xff]
    %v1580 = vld [vmem:[%s16 + $0x18] sm:$0xff]
    %v1581 = vld [vmem:[%s17] sm:$0x1]
    %v1583 = vperm.slane %v1581, 0
    %v1586 = vsel %vm72, %v1575, 0
    %1588 = vmatpush.msra.mxu0 0.0
    %1589 = vmatpush.msra.mxu0 0.0
    %1590 = vmatpush.msra.mxu0 0.0
    %1591 = vmatpush.msra.mxu0 0.0
    %1592 = vmatpush.msra.mxu0 0.0
    %1593 = vmatpush.msra.mxu0 0.0
    %1594 = vmatpush.msra.mxu0 0.0
    %1595 = vmatpush.msra.mxu0 0.0
    %1596 = vmatpush.msra.mxu0 0.0
    %1597 = vmatpush.msra.mxu0 0.0
    %1598 = vmatpush.msra.mxu0 0.0
    %1599 = vmatpush.msra.mxu0 0.0
    %1600 = vmatpush.msra.mxu0 %v1580
    %1601 = vmatpush.msra.mxu0 %v1579
    %1602 = vmatpush.msra.mxu0 %v1578
    %1603 = vmatpush.msra.mxu0 %v1577
    %1604 = vmatmul.f32.gmra.mxu0 %v1586
    %v1605 = vpop.f32.mrf.mxu0
    %v1606 = vadd.f32 %v1583, %v1605
    %1607 = vdwg.mxu0
    %v1608 = vtanh.pop %v1606
    %v1609 = vld [vmem:[%s18] sm:$0xff]
    %v1610 = vld [vmem:[%s18 + $0x8] sm:$0xff]
    %v1611 = vld [vmem:[%s18 + $0x10] sm:$0xff]
    %v1612 = vld [vmem:[%s18 + $0x18] sm:$0xff]
    %v1613 = vld [vmem:[%s19] sm:$0x1]
    %v1615 = vperm.slane %v1613, 0
    %v1618 = vsel %vm72, %v1608, 0
    %1620 = vmatpush.msra.mxu0 0.0
    %1621 = vmatpush.msra.mxu0 0.0
    %1622 = vmatpush.msra.mxu0 0.0
    %1623 = vmatpush.msra.mxu0 0.0
    %1624 = vmatpush.msra.mxu0 0.0
    %1625 = vmatpush.msra.mxu0 0.0
    %1626 = vmatpush.msra.mxu0 0.0
    %1627 = vmatpush.msra.mxu0 0.0
    %1628 = vmatpush.msra.mxu0 0.0
    %1629 = vmatpush.msra.mxu0 0.0
    %1630 = vmatpush.msra.mxu0 0.0
    %1631 = vmatpush.msra.mxu0 0.0
    %1632 = vmatpush.msra.mxu0 %v1612
    %1633 = vmatpush.msra.mxu0 %v1611
    %1634 = vmatpush.msra.mxu0 %v1610
    %1635 = vmatpush.msra.mxu0 %v1609
    %1636 = vmatmul.f32.gmra.mxu0 %v1618
    %v1637 = vpop.f32.mrf.mxu0
    %v1638 = vadd.f32 %v1615, %v1637
    %1639 = vdwg.mxu0
    %1640 = vst [vmem:[#allocation2] sm:$0x3] %v1638
    // Predicated region
    $region82: #{classify_forward.1} parent=1 // pred_check
      _
    $region83: #{classify_forward.1} parent=1 // pred_check_branch
      %1642 = sbr.rel (0) target = $region85
    $region84: #{classify_forward.1} parent=1 // pred_region
      %1644 = vsyncadd [#allocation3], 0
      %s1646 = sshll.u32 [#allocation2], 4
      %s1647 = int_to_ptr.vmem [resolvable:$true] %s1646
      %s1648 = sshll.u32 %s20, 4
      %s1649 = int_to_ptr.hbm [resolvable:$true] %s1648
      %1651 = dma.vmem_to_hbm [thread:$0]  %s1647, 32, %s1649, [#allocation3]
    $region85: #{classify_forward.1} parent=1 // pred_fallthru
      _
    // Predicated region
    $region86: #{classify_forward.1} parent=1 // pred_check
      _
    $region87: #{classify_forward.1} parent=1 // pred_check_branch
      %1653 = sbr.rel (0) target = $region89
    $region88: #{classify_forward.1} parent=1 // pred_region
      %1655 = dma.done [#allocation3], 32
    $region89: #{classify_forward.1} parent=1 // pred_fallthru
      _
    %1656 = vsyncpa [#allocation3], 1

</llo_original>
